<compile_context>
chip_gen: v5e
topology: v5e:2x2
jax: 0.10.0
libtpu: 0.0.40
codegen_flags: <defaults>
</compile_context>

<pallas_src>
import jax
import jax.numpy as jnp
from jax import lax
from jax.experimental import pallas as pl
from jax.experimental.pallas import tpu as pltpu

# ----------------------------- problem sizes --------------------------------
N = 4            # batch (EEG epochs)
P = 4            # raw EEG channels
T = 128          # time samples (lane-aligned)
K = 7            # wavelet kernel length (odd -> 'same' padding)
PAD = K // 2
F_OUT = 8        # wavelet filter bank output channels
NUM_CLASSES = 2  # labels y in {0,1}
C_SPAT = 8       # XDAWN spatial components
C_OUT = 8        # BiMap output dimension
EPS = 1e-4       # covariance shrinkage


# ------------------------------- kernel -------------------------------------
def jade_kernel(y_ref,       # SMEM (N,) int32 class labels (scalar prefetch)
                x_ref,       # (N, P, T)                  raw EEG
                wave_ref,    # (K, F_OUT, P)              wavelet taps
                xdawn_ref,   # (NUM_CLASSES, C_SPAT, F_OUT) xdawn filter banks
                bimap_ref,   # (C_OUT, C_SPAT)            BiMap weight
                out_ref):    # (N*C_OUT, C_OUT)           SPD feature slab
    f32 = jnp.float32
    b = bimap_ref[...]                                              # (C_OUT, C_SPAT)

    # eps*I shrinkage pushed through the BiMap congruence:
    #   B (C + eps I) B^T = B C B^T + eps * B B^T   (constant, computed once).
    eps_bbt = EPS * lax.dot_general(b, b, (((1,), (1,)), ((), ())),
                                    preferred_element_type=f32)     # (C_OUT, C_OUT)

    # Fold BiMap o xdawn for BOTH classes: M_both = [B @ xdawn[0]; B @ xdawn[1]].
    m0 = jnp.dot(b, xdawn_ref[0], preferred_element_type=f32)       # (C_OUT, F_OUT)
    m1 = jnp.dot(b, xdawn_ref[1], preferred_element_type=f32)
    m_both = jnp.concatenate([m0, m1], axis=0)                      # (2*C_OUT, F_OUT)

    # Whole input resident in vregs: one (P, T) tile per sample (leading index).
    xs = [x_ref[n] for n in range(N)]
    acc = [jnp.zeros((NUM_CLASSES * C_OUT, T), f32) for _ in range(N)]

    # Temporal shift operators for the 'same'-padded conv:
    #   S_d[j, t] = 1  iff  j == t + d   (zero boundary handling is automatic:
    #   columns with t + d outside [0, T) are all-zero).  Built from one hoisted
    #   iota difference; only the current S_d is live inside the k loop.
    jj = lax.broadcasted_iota(jnp.int32, (T, T), 0)
    tt = lax.broadcasted_iota(jnp.int32, (T, T), 1)
    diff = jj - tt                                                  # (T, T) int32

    for k in range(K):
        d = k - PAD
        s_d = (diff == d).astype(f32)                               # (T, T)
        # Fold the k-th wavelet tap through (BiMap o xdawn): G_k = M_both @ W_k.
        g_k = jnp.dot(m_both, wave_ref[k], preferred_element_type=f32)   # (2C_OUT, P)
        for n in range(N):
            shifted = jnp.dot(xs[n], s_d, preferred_element_type=f32)    # (P, T)
            acc[n] = acc[n] + jnp.dot(g_k, shifted,
                                      preferred_element_type=f32)        # (2C_OUT, T)

    inv_tm1 = 1.0 / (T - 1)
    for n in range(N):
        cls = y_ref[n]                                              # scalar from SMEM
        z_both = acc[n]                                             # (2*C_OUT, T)
        # class selection (NUM_CLASSES == 2); both slices are sublane-aligned.
        z = jnp.where(cls == 0, z_both[0:C_OUT, :], z_both[C_OUT:2 * C_OUT, :])
        zc = z - jnp.mean(z, axis=1, keepdims=True)                 # center over time
        gram = lax.dot_general(zc, zc, (((1,), (1,)), ((), ())),
                               preferred_element_type=f32)          # (C_OUT, C_OUT)
        spd = gram * inv_tm1 + eps_bbt
        # direct, sublane-aligned store of this sample's SPD block.
        out_ref[n * C_OUT:(n + 1) * C_OUT, :] = spd.astype(out_ref.dtype)


# ------------------------------- wrapper -------------------------------------
@jax.jit
def jade_forward(X, y, wave_w, xdawn_w, bimap_w):
    """X: (N, P, T) float32, y: (N,) int32. Returns ((N, C_OUT, C_OUT), None)."""
    grid_spec = pltpu.PrefetchScalarGridSpec(
        num_scalar_prefetch=1,                                   # y -> SMEM
        grid=(1,),                                               # single resident step
        in_specs=[
            pl.BlockSpec((N, P, T), lambda i, y: (0, 0, 0)),
            pl.BlockSpec((K, F_OUT, P), lambda i, y: (0, 0, 0)),
            pl.BlockSpec((NUM_CLASSES, C_SPAT, F_OUT), lambda i, y: (0, 0, 0)),
            pl.BlockSpec((C_OUT, C_SPAT), lambda i, y: (0, 0)),
        ],
        out_specs=pl.BlockSpec((N * C_OUT, C_OUT), lambda i, y: (0, 0)),
    )

    cost = pl.CostEstimate(flops=4_300_000, transcendentals=0, bytes_accessed=11_000)

    out = pl.pallas_call(
        jade_kernel,
        out_shape=jax.ShapeDtypeStruct((N * C_OUT, C_OUT), jnp.float32),
        grid_spec=grid_spec,
        compiler_params=pltpu.CompilerParams(
            dimension_semantics=("arbitrary",)),
        cost_estimate=cost,
    )(y, X, wave_w, xdawn_w, bimap_w)

    spd = out.reshape(N, C_OUT, C_OUT)                           # zero-cost view
    # Jade(visu=False) returns (X_hat, None); the numpy "out" visu list is host-side
    # bookkeeping only.  # TODO(synk): visu=True intermediate dumps are not kernel work.
    return spd, None


# ------------------------------ reference ------------------------------------
def jade_reference(X, y, wave_w, xdawn_w, bimap_w):
    pad = K // 2
    xpad = jnp.pad(X, ((0, 0), (0, 0), (pad, pad)))
    # wave conv
    wav = jnp.zeros((N, F_OUT, T), jnp.float32)
    for k in range(K):
        wav = wav + jnp.einsum("fp,npt->nft", wave_w[k], xpad[:, :, k:k + T])
    # xdawn
    w_sel = xdawn_w[y]                                   # (N, C_SPAT, F_OUT)
    xs = jnp.einsum("ncf,nft->nct", w_sel, wav)
    # spd
    xc = xs - jnp.mean(xs, axis=2, keepdims=True)
    cov = jnp.einsum("nct,ndt->ncd", xc, xc) / (T - 1)
    cov = cov + EPS * jnp.eye(C_SPAT)[None]
    return jnp.einsum("oc,ncd,pd->nop", bimap_w, cov, bimap_w)


# --------------------------------- main ---------------------------------------
if __name__ == "__main__":
    key = jax.random.PRNGKey(0)
    kx, kw, kd, kb = jax.random.split(key, 4)

    X = jax.random.normal(kx, (N, P, T), dtype=jnp.float32)
    y = jnp.array([0, 1, 0, 1], dtype=jnp.int32)

    # deterministic synthetic parameters
    wave_w = 0.1 * jax.random.normal(kw, (K, F_OUT, P), dtype=jnp.float32)
    xdawn_w = 0.1 * jax.random.normal(kd, (NUM_CLASSES, C_SPAT, F_OUT), dtype=jnp.float32)
    bimap_w = 0.1 * jax.random.normal(kb, (C_OUT, C_SPAT), dtype=jnp.float32)

    spd, _ = jade_forward(X, y, wave_w, xdawn_w, bimap_w)
    spd = jax.block_until_ready(spd)

    ref = jade_reference(X, y, wave_w, xdawn_w, bimap_w)
    assert spd.shape == (N, C_OUT, C_OUT)
    assert jnp.allclose(spd, ref, atol=1e-4, rtol=1e-4), \
        f"max abs err = {jnp.max(jnp.abs(spd - ref))}"

    print("KERNEL_OK")
</pallas_src>

<mosaic_0001>
module attributes {stable_mosaic.version = 11 : i64} {
  func.func @jade_kernel(%arg0: i32, %arg1: memref<4xi32, #tpu.memory_space<smem>>, %arg2: memref<4x4x128xf32, #tpu.memory_space<vmem>>, %arg3: memref<7x8x4xf32, #tpu.memory_space<vmem>>, %arg4: memref<2x8x8xf32, #tpu.memory_space<vmem>>, %arg5: memref<8x8xf32, #tpu.memory_space<vmem>>, %arg6: memref<32x8xf32, #tpu.memory_space<vmem>>) attributes {dimension_semantics = [#tpu.dimension_semantics<arbitrary>], iteration_bounds = array<i64: 1>, scalar_prefetch = 1 : i64, scratch_operands = 0 : i64, tpu.core_type = #tpu.core_type<tc>, window_params = [{pipeline_mode = #tpu.pipeline_mode<synchronous>, transform_indices = @transform_0, window_bounds = array<i64: 4, 4, 128>}, {pipeline_mode = #tpu.pipeline_mode<synchronous>, transform_indices = @transform_1, window_bounds = array<i64: 7, 8, 4>}, {pipeline_mode = #tpu.pipeline_mode<synchronous>, transform_indices = @transform_2, window_bounds = array<i64: 2, 8, 8>}, {pipeline_mode = #tpu.pipeline_mode<synchronous>, transform_indices = @transform_3, window_bounds = array<i64: 8, 8>}, {pipeline_mode = #tpu.pipeline_mode<synchronous>, transform_indices = @transform_4, window_bounds = array<i64: 32, 8>}]} {
    %c0 = arith.constant 0 : index
    %c0_0 = arith.constant 0 : index
    %0 = vector.load %arg5[%c0, %c0_0] : memref<8x8xf32, #tpu.memory_space<vmem>>, vector<8x8xf32>
    %cst = arith.constant dense<0.000000e+00> : vector<8x8xf32>
    %1 = tpu.matmul %0, %0, %cst {dimension_numbers = #tpu.dot_dimension_numbers<[1], [1], [0], [0], [0, 0, 1, 0], [], []>} : vector<8x8xf32>, vector<8x8xf32>, vector<8x8xf32> -> vector<8x8xf32>
    %cst_1 = arith.constant 9.99999974E-5 : f32
    %2 = vector.broadcast %cst_1 : f32 to vector<8x8xf32>
    %3 = arith.mulf %2, %1 : vector<8x8xf32>
    %c0_2 = arith.constant 0 : index
    %c0_3 = arith.constant 0 : index
    %c0_4 = arith.constant 0 : index
    %4 = vector.load %arg4[%c0_2, %c0_3, %c0_4] : memref<2x8x8xf32, #tpu.memory_space<vmem>>, vector<1x8x8xf32>
    %5 = vector.shape_cast %4 : vector<1x8x8xf32> to vector<8x8xf32>
    %cst_5 = arith.constant dense<0.000000e+00> : vector<8x8xf32>
    %6 = tpu.matmul %0, %5, %cst_5 {dimension_numbers = #tpu.dot_dimension_numbers<[1], [0], [0], [1], [0, 0, 1, 1], [], []>} : vector<8x8xf32>, vector<8x8xf32>, vector<8x8xf32> -> vector<8x8xf32>
    %c1 = arith.constant 1 : index
    %c0_6 = arith.constant 0 : index
    %c0_7 = arith.constant 0 : index
    %7 = vector.load %arg4[%c1, %c0_6, %c0_7] : memref<2x8x8xf32, #tpu.memory_space<vmem>>, vector<1x8x8xf32>
    %8 = vector.shape_cast %7 : vector<1x8x8xf32> to vector<8x8xf32>
    %cst_8 = arith.constant dense<0.000000e+00> : vector<8x8xf32>
    %9 = tpu.matmul %0, %8, %cst_8 {dimension_numbers = #tpu.dot_dimension_numbers<[1], [0], [0], [1], [0, 0, 1, 1], [], []>} : vector<8x8xf32>, vector<8x8xf32>, vector<8x8xf32> -> vector<8x8xf32>
    %10 = tpu.concatenate %6, %9 in 0 : vector<8x8xf32>, vector<8x8xf32> -> vector<16x8xf32>
    %c0_9 = arith.constant 0 : index
    %c0_10 = arith.constant 0 : index
    %c0_11 = arith.constant 0 : index
    %11 = vector.load %arg2[%c0_9, %c0_10, %c0_11] : memref<4x4x128xf32, #tpu.memory_space<vmem>>, vector<1x4x128xf32>
    %12 = vector.shape_cast %11 : vector<1x4x128xf32> to vector<4x128xf32>
    %c1_12 = arith.constant 1 : index
    %c0_13 = arith.constant 0 : index
    %c0_14 = arith.constant 0 : index
    %13 = vector.load %arg2[%c1_12, %c0_13, %c0_14] : memref<4x4x128xf32, #tpu.memory_space<vmem>>, vector<1x4x128xf32>
    %14 = vector.shape_cast %13 : vector<1x4x128xf32> to vector<4x128xf32>
    %c2 = arith.constant 2 : index
    %c0_15 = arith.constant 0 : index
    %c0_16 = arith.constant 0 : index
    %15 = vector.load %arg2[%c2, %c0_15, %c0_16] : memref<4x4x128xf32, #tpu.memory_space<vmem>>, vector<1x4x128xf32>
    %16 = vector.shape_cast %15 : vector<1x4x128xf32> to vector<4x128xf32>
    %c3 = arith.constant 3 : index
    %c0_17 = arith.constant 0 : index
    %c0_18 = arith.constant 0 : index
    %17 = vector.load %arg2[%c3, %c0_17, %c0_18] : memref<4x4x128xf32, #tpu.memory_space<vmem>>, vector<1x4x128xf32>
    %18 = vector.shape_cast %17 : vector<1x4x128xf32> to vector<4x128xf32>
    %cst_19 = arith.constant 0.000000e+00 : f32
    %19 = vector.broadcast %cst_19 : f32 to vector<16x128xf32>
    %cst_20 = arith.constant 0.000000e+00 : f32
    %20 = vector.broadcast %cst_20 : f32 to vector<16x128xf32>
    %cst_21 = arith.constant 0.000000e+00 : f32
    %21 = vector.broadcast %cst_21 : f32 to vector<16x128xf32>
    %cst_22 = arith.constant 0.000000e+00 : f32
    %22 = vector.broadcast %cst_22 : f32 to vector<16x128xf32>
    %23 = tpu.iota {dimensions = array<i32: 0>} : vector<128x128xi32>
    %24 = tpu.iota {dimensions = array<i32: 1>} : vector<128x128xi32>
    %25 = arith.subi %23, %24 : vector<128x128xi32>
    %c-3_i32 = arith.constant -3 : i32
    %26 = vector.broadcast %c-3_i32 : i32 to vector<128x128xi32>
    %27 = arith.cmpi eq, %25, %26 : vector<128x128xi32>
    %28 = arith.extui %27 : vector<128x128xi1> to vector<128x128xi32>
    %29 = arith.sitofp %28 : vector<128x128xi32> to vector<128x128xf32>
    %c0_23 = arith.constant 0 : index
    %c0_24 = arith.constant 0 : index
    %c0_25 = arith.constant 0 : index
    %30 = vector.load %arg3[%c0_23, %c0_24, %c0_25] : memref<7x8x4xf32, #tpu.memory_space<vmem>>, vector<1x8x4xf32>
    %31 = vector.shape_cast %30 : vector<1x8x4xf32> to vector<8x4xf32>
    %cst_26 = arith.constant dense<0.000000e+00> : vector<16x4xf32>
    %32 = tpu.matmul %10, %31, %cst_26 {dimension_numbers = #tpu.dot_dimension_numbers<[1], [0], [0], [1], [0, 0, 1, 1], [], []>} : vector<16x8xf32>, vector<8x4xf32>, vector<16x4xf32> -> vector<16x4xf32>
    %cst_27 = arith.constant dense<0.000000e+00> : vector<4x128xf32>
    %33 = tpu.matmul %12, %29, %cst_27 {dimension_numbers = #tpu.dot_dimension_numbers<[1], [0], [0], [1], [0, 0, 1, 1], [], []>} : vector<4x128xf32>, vector<128x128xf32>, vector<4x128xf32> -> vector<4x128xf32>
    %cst_28 = arith.constant dense<0.000000e+00> : vector<16x128xf32>
    %34 = tpu.matmul %32, %33, %cst_28 {dimension_numbers = #tpu.dot_dimension_numbers<[1], [0], [0], [1], [0, 0, 1, 1], [], []>} : vector<16x4xf32>, vector<4x128xf32>, vector<16x128xf32> -> vector<16x128xf32>
    %35 = arith.addf %19, %34 : vector<16x128xf32>
    %cst_29 = arith.constant dense<0.000000e+00> : vector<4x128xf32>
    %36 = tpu.matmul %14, %29, %cst_29 {dimension_numbers = #tpu.dot_dimension_numbers<[1], [0], [0], [1], [0, 0, 1, 1], [], []>} : vector<4x128xf32>, vector<128x128xf32>, vector<4x128xf32> -> vector<4x128xf32>
    %cst_30 = arith.constant dense<0.000000e+00> : vector<16x128xf32>
    %37 = tpu.matmul %32, %36, %cst_30 {dimension_numbers = #tpu.dot_dimension_numbers<[1], [0], [0], [1], [0, 0, 1, 1], [], []>} : vector<16x4xf32>, vector<4x128xf32>, vector<16x128xf32> -> vector<16x128xf32>
    %38 = arith.addf %20, %37 : vector<16x128xf32>
    %cst_31 = arith.constant dense<0.000000e+00> : vector<4x128xf32>
    %39 = tpu.matmul %16, %29, %cst_31 {dimension_numbers = #tpu.dot_dimension_numbers<[1], [0], [0], [1], [0, 0, 1, 1], [], []>} : vector<4x128xf32>, vector<128x128xf32>, vector<4x128xf32> -> vector<4x128xf32>
    %cst_32 = arith.constant dense<0.000000e+00> : vector<16x128xf32>
    %40 = tpu.matmul %32, %39, %cst_32 {dimension_numbers = #tpu.dot_dimension_numbers<[1], [0], [0], [1], [0, 0, 1, 1], [], []>} : vector<16x4xf32>, vector<4x128xf32>, vector<16x128xf32> -> vector<16x128xf32>
    %41 = arith.addf %21, %40 : vector<16x128xf32>
    %cst_33 = arith.constant dense<0.000000e+00> : vector<4x128xf32>
    %42 = tpu.matmul %18, %29, %cst_33 {dimension_numbers = #tpu.dot_dimension_numbers<[1], [0], [0], [1], [0, 0, 1, 1], [], []>} : vector<4x128xf32>, vector<128x128xf32>, vector<4x128xf32> -> vector<4x128xf32>
    %cst_34 = arith.constant dense<0.000000e+00> : vector<16x128xf32>
    %43 = tpu.matmul %32, %42, %cst_34 {dimension_numbers = #tpu.dot_dimension_numbers<[1], [0], [0], [1], [0, 0, 1, 1], [], []>} : vector<16x4xf32>, vector<4x128xf32>, vector<16x128xf32> -> vector<16x128xf32>
    %44 = arith.addf %22, %43 : vector<16x128xf32>
    %c-2_i32 = arith.constant -2 : i32
    %45 = vector.broadcast %c-2_i32 : i32 to vector<128x128xi32>
    %46 = arith.cmpi eq, %25, %45 : vector<128x128xi32>
    %47 = arith.extui %46 : vector<128x128xi1> to vector<128x128xi32>
    %48 = arith.sitofp %47 : vector<128x128xi32> to vector<128x128xf32>
    %c1_35 = arith.constant 1 : index
    %c0_36 = arith.constant 0 : index
    %c0_37 = arith.constant 0 : index
    %49 = vector.load %arg3[%c1_35, %c0_36, %c0_37] : memref<7x8x4xf32, #tpu.memory_space<vmem>>, vector<1x8x4xf32>
    %50 = vector.shape_cast %49 : vector<1x8x4xf32> to vector<8x4xf32>
    %cst_38 = arith.constant dense<0.000000e+00> : vector<16x4xf32>
    %51 = tpu.matmul %10, %50, %cst_38 {dimension_numbers = #tpu.dot_dimension_numbers<[1], [0], [0], [1], [0, 0, 1, 1], [], []>} : vector<16x8xf32>, vector<8x4xf32>, vector<16x4xf32> -> vector<16x4xf32>
    %cst_39 = arith.constant dense<0.000000e+00> : vector<4x128xf32>
    %52 = tpu.matmul %12, %48, %cst_39 {dimension_numbers = #tpu.dot_dimension_numbers<[1], [0], [0], [1], [0, 0, 1, 1], [], []>} : vector<4x128xf32>, vector<128x128xf32>, vector<4x128xf32> -> vector<4x128xf32>
    %cst_40 = arith.constant dense<0.000000e+00> : vector<16x128xf32>
    %53 = tpu.matmul %51, %52, %cst_40 {dimension_numbers = #tpu.dot_dimension_numbers<[1], [0], [0], [1], [0, 0, 1, 1], [], []>} : vector<16x4xf32>, vector<4x128xf32>, vector<16x128xf32> -> vector<16x128xf32>
    %54 = arith.addf %35, %53 : vector<16x128xf32>
    %cst_41 = arith.constant dense<0.000000e+00> : vector<4x128xf32>
    %55 = tpu.matmul %14, %48, %cst_41 {dimension_numbers = #tpu.dot_dimension_numbers<[1], [0], [0], [1], [0, 0, 1, 1], [], []>} : vector<4x128xf32>, vector<128x128xf32>, vector<4x128xf32> -> vector<4x128xf32>
    %cst_42 = arith.constant dense<0.000000e+00> : vector<16x128xf32>
    %56 = tpu.matmul %51, %55, %cst_42 {dimension_numbers = #tpu.dot_dimension_numbers<[1], [0], [0], [1], [0, 0, 1, 1], [], []>} : vector<16x4xf32>, vector<4x128xf32>, vector<16x128xf32> -> vector<16x128xf32>
    %57 = arith.addf %38, %56 : vector<16x128xf32>
    %cst_43 = arith.constant dense<0.000000e+00> : vector<4x128xf32>
    %58 = tpu.matmul %16, %48, %cst_43 {dimension_numbers = #tpu.dot_dimension_numbers<[1], [0], [0], [1], [0, 0, 1, 1], [], []>} : vector<4x128xf32>, vector<128x128xf32>, vector<4x128xf32> -> vector<4x128xf32>
    %cst_44 = arith.constant dense<0.000000e+00> : vector<16x128xf32>
    %59 = tpu.matmul %51, %58, %cst_44 {dimension_numbers = #tpu.dot_dimension_numbers<[1], [0], [0], [1], [0, 0, 1, 1], [], []>} : vector<16x4xf32>, vector<4x128xf32>, vector<16x128xf32> -> vector<16x128xf32>
    %60 = arith.addf %41, %59 : vector<16x128xf32>
    %cst_45 = arith.constant dense<0.000000e+00> : vector<4x128xf32>
    %61 = tpu.matmul %18, %48, %cst_45 {dimension_numbers = #tpu.dot_dimension_numbers<[1], [0], [0], [1], [0, 0, 1, 1], [], []>} : vector<4x128xf32>, vector<128x128xf32>, vector<4x128xf32> -> vector<4x128xf32>
    %cst_46 = arith.constant dense<0.000000e+00> : vector<16x128xf32>
    %62 = tpu.matmul %51, %61, %cst_46 {dimension_numbers = #tpu.dot_dimension_numbers<[1], [0], [0], [1], [0, 0, 1, 1], [], []>} : vector<16x4xf32>, vector<4x128xf32>, vector<16x128xf32> -> vector<16x128xf32>
    %63 = arith.addf %44, %62 : vector<16x128xf32>
    %c-1_i32 = arith.constant -1 : i32
    %64 = vector.broadcast %c-1_i32 : i32 to vector<128x128xi32>
    %65 = arith.cmpi eq, %25, %64 : vector<128x128xi32>
    %66 = arith.extui %65 : vector<128x128xi1> to vector<128x128xi32>
    %67 = arith.sitofp %66 : vector<128x128xi32> to vector<128x128xf32>
    %c2_47 = arith.constant 2 : index
    %c0_48 = arith.constant 0 : index
    %c0_49 = arith.constant 0 : index
    %68 = vector.load %arg3[%c2_47, %c0_48, %c0_49] : memref<7x8x4xf32, #tpu.memory_space<vmem>>, vector<1x8x4xf32>
    %69 = vector.shape_cast %68 : vector<1x8x4xf32> to vector<8x4xf32>
    %cst_50 = arith.constant dense<0.000000e+00> : vector<16x4xf32>
    %70 = tpu.matmul %10, %69, %cst_50 {dimension_numbers = #tpu.dot_dimension_numbers<[1], [0], [0], [1], [0, 0, 1, 1], [], []>} : vector<16x8xf32>, vector<8x4xf32>, vector<16x4xf32> -> vector<16x4xf32>
    %cst_51 = arith.constant dense<0.000000e+00> : vector<4x128xf32>
    %71 = tpu.matmul %12, %67, %cst_51 {dimension_numbers = #tpu.dot_dimension_numbers<[1], [0], [0], [1], [0, 0, 1, 1], [], []>} : vector<4x128xf32>, vector<128x128xf32>, vector<4x128xf32> -> vector<4x128xf32>
    %cst_52 = arith.constant dense<0.000000e+00> : vector<16x128xf32>
    %72 = tpu.matmul %70, %71, %cst_52 {dimension_numbers = #tpu.dot_dimension_numbers<[1], [0], [0], [1], [0, 0, 1, 1], [], []>} : vector<16x4xf32>, vector<4x128xf32>, vector<16x128xf32> -> vector<16x128xf32>
    %73 = arith.addf %54, %72 : vector<16x128xf32>
    %cst_53 = arith.constant dense<0.000000e+00> : vector<4x128xf32>
    %74 = tpu.matmul %14, %67, %cst_53 {dimension_numbers = #tpu.dot_dimension_numbers<[1], [0], [0], [1], [0, 0, 1, 1], [], []>} : vector<4x128xf32>, vector<128x128xf32>, vector<4x128xf32> -> vector<4x128xf32>
    %cst_54 = arith.constant dense<0.000000e+00> : vector<16x128xf32>
    %75 = tpu.matmul %70, %74, %cst_54 {dimension_numbers = #tpu.dot_dimension_numbers<[1], [0], [0], [1], [0, 0, 1, 1], [], []>} : vector<16x4xf32>, vector<4x128xf32>, vector<16x128xf32> -> vector<16x128xf32>
    %76 = arith.addf %57, %75 : vector<16x128xf32>
    %cst_55 = arith.constant dense<0.000000e+00> : vector<4x128xf32>
    %77 = tpu.matmul %16, %67, %cst_55 {dimension_numbers = #tpu.dot_dimension_numbers<[1], [0], [0], [1], [0, 0, 1, 1], [], []>} : vector<4x128xf32>, vector<128x128xf32>, vector<4x128xf32> -> vector<4x128xf32>
    %cst_56 = arith.constant dense<0.000000e+00> : vector<16x128xf32>
    %78 = tpu.matmul %70, %77, %cst_56 {dimension_numbers = #tpu.dot_dimension_numbers<[1], [0], [0], [1], [0, 0, 1, 1], [], []>} : vector<16x4xf32>, vector<4x128xf32>, vector<16x128xf32> -> vector<16x128xf32>
    %79 = arith.addf %60, %78 : vector<16x128xf32>
    %cst_57 = arith.constant dense<0.000000e+00> : vector<4x128xf32>
    %80 = tpu.matmul %18, %67, %cst_57 {dimension_numbers = #tpu.dot_dimension_numbers<[1], [0], [0], [1], [0, 0, 1, 1], [], []>} : vector<4x128xf32>, vector<128x128xf32>, vector<4x128xf32> -> vector<4x128xf32>
    %cst_58 = arith.constant dense<0.000000e+00> : vector<16x128xf32>
    %81 = tpu.matmul %70, %80, %cst_58 {dimension_numbers = #tpu.dot_dimension_numbers<[1], [0], [0], [1], [0, 0, 1, 1], [], []>} : vector<16x4xf32>, vector<4x128xf32>, vector<16x128xf32> -> vector<16x128xf32>
    %82 = arith.addf %63, %81 : vector<16x128xf32>
    %c0_i32 = arith.constant 0 : i32
    %83 = vector.broadcast %c0_i32 : i32 to vector<128x128xi32>
    %84 = arith.cmpi eq, %25, %83 : vector<128x128xi32>
    %85 = arith.extui %84 : vector<128x128xi1> to vector<128x128xi32>
    %86 = arith.sitofp %85 : vector<128x128xi32> to vector<128x128xf32>
    %c3_59 = arith.constant 3 : index
    %c0_60 = arith.constant 0 : index
    %c0_61 = arith.constant 0 : index
    %87 = vector.load %arg3[%c3_59, %c0_60, %c0_61] : memref<7x8x4xf32, #tpu.memory_space<vmem>>, vector<1x8x4xf32>
    %88 = vector.shape_cast %87 : vector<1x8x4xf32> to vector<8x4xf32>
    %cst_62 = arith.constant dense<0.000000e+00> : vector<16x4xf32>
    %89 = tpu.matmul %10, %88, %cst_62 {dimension_numbers = #tpu.dot_dimension_numbers<[1], [0], [0], [1], [0, 0, 1, 1], [], []>} : vector<16x8xf32>, vector<8x4xf32>, vector<16x4xf32> -> vector<16x4xf32>
    %cst_63 = arith.constant dense<0.000000e+00> : vector<4x128xf32>
    %90 = tpu.matmul %12, %86, %cst_63 {dimension_numbers = #tpu.dot_dimension_numbers<[1], [0], [0], [1], [0, 0, 1, 1], [], []>} : vector<4x128xf32>, vector<128x128xf32>, vector<4x128xf32> -> vector<4x128xf32>
    %cst_64 = arith.constant dense<0.000000e+00> : vector<16x128xf32>
    %91 = tpu.matmul %89, %90, %cst_64 {dimension_numbers = #tpu.dot_dimension_numbers<[1], [0], [0], [1], [0, 0, 1, 1], [], []>} : vector<16x4xf32>, vector<4x128xf32>, vector<16x128xf32> -> vector<16x128xf32>
    %92 = arith.addf %73, %91 : vector<16x128xf32>
    %cst_65 = arith.constant dense<0.000000e+00> : vector<4x128xf32>
    %93 = tpu.matmul %14, %86, %cst_65 {dimension_numbers = #tpu.dot_dimension_numbers<[1], [0], [0], [1], [0, 0, 1, 1], [], []>} : vector<4x128xf32>, vector<128x128xf32>, vector<4x128xf32> -> vector<4x128xf32>
    %cst_66 = arith.constant dense<0.000000e+00> : vector<16x128xf32>
    %94 = tpu.matmul %89, %93, %cst_66 {dimension_numbers = #tpu.dot_dimension_numbers<[1], [0], [0], [1], [0, 0, 1, 1], [], []>} : vector<16x4xf32>, vector<4x128xf32>, vector<16x128xf32> -> vector<16x128xf32>
    %95 = arith.addf %76, %94 : vector<16x128xf32>
    %cst_67 = arith.constant dense<0.000000e+00> : vector<4x128xf32>
    %96 = tpu.matmul %16, %86, %cst_67 {dimension_numbers = #tpu.dot_dimension_numbers<[1], [0], [0], [1], [0, 0, 1, 1], [], []>} : vector<4x128xf32>, vector<128x128xf32>, vector<4x128xf32> -> vector<4x128xf32>
    %cst_68 = arith.constant dense<0.000000e+00> : vector<16x128xf32>
    %97 = tpu.matmul %89, %96, %cst_68 {dimension_numbers = #tpu.dot_dimension_numbers<[1], [0], [0], [1], [0, 0, 1, 1], [], []>} : vector<16x4xf32>, vector<4x128xf32>, vector<16x128xf32> -> vector<16x128xf32>
    %98 = arith.addf %79, %97 : vector<16x128xf32>
    %cst_69 = arith.constant dense<0.000000e+00> : vector<4x128xf32>
    %99 = tpu.matmul %18, %86, %cst_69 {dimension_numbers = #tpu.dot_dimension_numbers<[1], [0], [0], [1], [0, 0, 1, 1], [], []>} : vector<4x128xf32>, vector<128x128xf32>, vector<4x128xf32> -> vector<4x128xf32>
    %cst_70 = arith.constant dense<0.000000e+00> : vector<16x128xf32>
    %100 = tpu.matmul %89, %99, %cst_70 {dimension_numbers = #tpu.dot_dimension_numbers<[1], [0], [0], [1], [0, 0, 1, 1], [], []>} : vector<16x4xf32>, vector<4x128xf32>, vector<16x128xf32> -> vector<16x128xf32>
    %101 = arith.addf %82, %100 : vector<16x128xf32>
    %c1_i32 = arith.constant 1 : i32
    %102 = vector.broadcast %c1_i32 : i32 to vector<128x128xi32>
    %103 = arith.cmpi eq, %25, %102 : vector<128x128xi32>
    %104 = arith.extui %103 : vector<128x128xi1> to vector<128x128xi32>
    %105 = arith.sitofp %104 : vector<128x128xi32> to vector<128x128xf32>
    %c4 = arith.constant 4 : index
    %c0_71 = arith.constant 0 : index
    %c0_72 = arith.constant 0 : index
    %106 = vector.load %arg3[%c4, %c0_71, %c0_72] : memref<7x8x4xf32, #tpu.memory_space<vmem>>, vector<1x8x4xf32>
    %107 = vector.shape_cast %106 : vector<1x8x4xf32> to vector<8x4xf32>
    %cst_73 = arith.constant dense<0.000000e+00> : vector<16x4xf32>
    %108 = tpu.matmul %10, %107, %cst_73 {dimension_numbers = #tpu.dot_dimension_numbers<[1], [0], [0], [1], [0, 0, 1, 1], [], []>} : vector<16x8xf32>, vector<8x4xf32>, vector<16x4xf32> -> vector<16x4xf32>
    %cst_74 = arith.constant dense<0.000000e+00> : vector<4x128xf32>
    %109 = tpu.matmul %12, %105, %cst_74 {dimension_numbers = #tpu.dot_dimension_numbers<[1], [0], [0], [1], [0, 0, 1, 1], [], []>} : vector<4x128xf32>, vector<128x128xf32>, vector<4x128xf32> -> vector<4x128xf32>
    %cst_75 = arith.constant dense<0.000000e+00> : vector<16x128xf32>
    %110 = tpu.matmul %108, %109, %cst_75 {dimension_numbers = #tpu.dot_dimension_numbers<[1], [0], [0], [1], [0, 0, 1, 1], [], []>} : vector<16x4xf32>, vector<4x128xf32>, vector<16x128xf32> -> vector<16x128xf32>
    %111 = arith.addf %92, %110 : vector<16x128xf32>
    %cst_76 = arith.constant dense<0.000000e+00> : vector<4x128xf32>
    %112 = tpu.matmul %14, %105, %cst_76 {dimension_numbers = #tpu.dot_dimension_numbers<[1], [0], [0], [1], [0, 0, 1, 1], [], []>} : vector<4x128xf32>, vector<128x128xf32>, vector<4x128xf32> -> vector<4x128xf32>
    %cst_77 = arith.constant dense<0.000000e+00> : vector<16x128xf32>
    %113 = tpu.matmul %108, %112, %cst_77 {dimension_numbers = #tpu.dot_dimension_numbers<[1], [0], [0], [1], [0, 0, 1, 1], [], []>} : vector<16x4xf32>, vector<4x128xf32>, vector<16x128xf32> -> vector<16x128xf32>
    %114 = arith.addf %95, %113 : vector<16x128xf32>
    %cst_78 = arith.constant dense<0.000000e+00> : vector<4x128xf32>
    %115 = tpu.matmul %16, %105, %cst_78 {dimension_numbers = #tpu.dot_dimension_numbers<[1], [0], [0], [1], [0, 0, 1, 1], [], []>} : vector<4x128xf32>, vector<128x128xf32>, vector<4x128xf32> -> vector<4x128xf32>
    %cst_79 = arith.constant dense<0.000000e+00> : vector<16x128xf32>
    %116 = tpu.matmul %108, %115, %cst_79 {dimension_numbers = #tpu.dot_dimension_numbers<[1], [0], [0], [1], [0, 0, 1, 1], [], []>} : vector<16x4xf32>, vector<4x128xf32>, vector<16x128xf32> -> vector<16x128xf32>
    %117 = arith.addf %98, %116 : vector<16x128xf32>
    %cst_80 = arith.constant dense<0.000000e+00> : vector<4x128xf32>
    %118 = tpu.matmul %18, %105, %cst_80 {dimension_numbers = #tpu.dot_dimension_numbers<[1], [0], [0], [1], [0, 0, 1, 1], [], []>} : vector<4x128xf32>, vector<128x128xf32>, vector<4x128xf32> -> vector<4x128xf32>
    %cst_81 = arith.constant dense<0.000000e+00> : vector<16x128xf32>
    %119 = tpu.matmul %108, %118, %cst_81 {dimension_numbers = #tpu.dot_dimension_numbers<[1], [0], [0], [1], [0, 0, 1, 1], [], []>} : vector<16x4xf32>, vector<4x128xf32>, vector<16x128xf32> -> vector<16x128xf32>
    %120 = arith.addf %101, %119 : vector<16x128xf32>
    %c2_i32 = arith.constant 2 : i32
    %121 = vector.broadcast %c2_i32 : i32 to vector<128x128xi32>
    %122 = arith.cmpi eq, %25, %121 : vector<128x128xi32>
    %123 = arith.extui %122 : vector<128x128xi1> to vector<128x128xi32>
    %124 = arith.sitofp %123 : vector<128x128xi32> to vector<128x128xf32>
    %c5 = arith.constant 5 : index
    %c0_82 = arith.constant 0 : index
    %c0_83 = arith.constant 0 : index
    %125 = vector.load %arg3[%c5, %c0_82, %c0_83] : memref<7x8x4xf32, #tpu.memory_space<vmem>>, vector<1x8x4xf32>
    %126 = vector.shape_cast %125 : vector<1x8x4xf32> to vector<8x4xf32>
    %cst_84 = arith.constant dense<0.000000e+00> : vector<16x4xf32>
    %127 = tpu.matmul %10, %126, %cst_84 {dimension_numbers = #tpu.dot_dimension_numbers<[1], [0], [0], [1], [0, 0, 1, 1], [], []>} : vector<16x8xf32>, vector<8x4xf32>, vector<16x4xf32> -> vector<16x4xf32>
    %cst_85 = arith.constant dense<0.000000e+00> : vector<4x128xf32>
    %128 = tpu.matmul %12, %124, %cst_85 {dimension_numbers = #tpu.dot_dimension_numbers<[1], [0], [0], [1], [0, 0, 1, 1], [], []>} : vector<4x128xf32>, vector<128x128xf32>, vector<4x128xf32> -> vector<4x128xf32>
    %cst_86 = arith.constant dense<0.000000e+00> : vector<16x128xf32>
    %129 = tpu.matmul %127, %128, %cst_86 {dimension_numbers = #tpu.dot_dimension_numbers<[1], [0], [0], [1], [0, 0, 1, 1], [], []>} : vector<16x4xf32>, vector<4x128xf32>, vector<16x128xf32> -> vector<16x128xf32>
    %130 = arith.addf %111, %129 : vector<16x128xf32>
    %cst_87 = arith.constant dense<0.000000e+00> : vector<4x128xf32>
    %131 = tpu.matmul %14, %124, %cst_87 {dimension_numbers = #tpu.dot_dimension_numbers<[1], [0], [0], [1], [0, 0, 1, 1], [], []>} : vector<4x128xf32>, vector<128x128xf32>, vector<4x128xf32> -> vector<4x128xf32>
    %cst_88 = arith.constant dense<0.000000e+00> : vector<16x128xf32>
    %132 = tpu.matmul %127, %131, %cst_88 {dimension_numbers = #tpu.dot_dimension_numbers<[1], [0], [0], [1], [0, 0, 1, 1], [], []>} : vector<16x4xf32>, vector<4x128xf32>, vector<16x128xf32> -> vector<16x128xf32>
    %133 = arith.addf %114, %132 : vector<16x128xf32>
    %cst_89 = arith.constant dense<0.000000e+00> : vector<4x128xf32>
    %134 = tpu.matmul %16, %124, %cst_89 {dimension_numbers = #tpu.dot_dimension_numbers<[1], [0], [0], [1], [0, 0, 1, 1], [], []>} : vector<4x128xf32>, vector<128x128xf32>, vector<4x128xf32> -> vector<4x128xf32>
    %cst_90 = arith.constant dense<0.000000e+00> : vector<16x128xf32>
    %135 = tpu.matmul %127, %134, %cst_90 {dimension_numbers = #tpu.dot_dimension_numbers<[1], [0], [0], [1], [0, 0, 1, 1], [], []>} : vector<16x4xf32>, vector<4x128xf32>, vector<16x128xf32> -> vector<16x128xf32>
    %136 = arith.addf %117, %135 : vector<16x128xf32>
    %cst_91 = arith.constant dense<0.000000e+00> : vector<4x128xf32>
    %137 = tpu.matmul %18, %124, %cst_91 {dimension_numbers = #tpu.dot_dimension_numbers<[1], [0], [0], [1], [0, 0, 1, 1], [], []>} : vector<4x128xf32>, vector<128x128xf32>, vector<4x128xf32> -> vector<4x128xf32>
    %cst_92 = arith.constant dense<0.000000e+00> : vector<16x128xf32>
    %138 = tpu.matmul %127, %137, %cst_92 {dimension_numbers = #tpu.dot_dimension_numbers<[1], [0], [0], [1], [0, 0, 1, 1], [], []>} : vector<16x4xf32>, vector<4x128xf32>, vector<16x128xf32> -> vector<16x128xf32>
    %139 = arith.addf %120, %138 : vector<16x128xf32>
    %c3_i32 = arith.constant 3 : i32
    %140 = vector.broadcast %c3_i32 : i32 to vector<128x128xi32>
    %141 = arith.cmpi eq, %25, %140 : vector<128x128xi32>
    %142 = arith.extui %141 : vector<128x128xi1> to vector<128x128xi32>
    %143 = arith.sitofp %142 : vector<128x128xi32> to vector<128x128xf32>
    %c6 = arith.constant 6 : index
    %c0_93 = arith.constant 0 : index
    %c0_94 = arith.constant 0 : index
    %144 = vector.load %arg3[%c6, %c0_93, %c0_94] : memref<7x8x4xf32, #tpu.memory_space<vmem>>, vector<1x8x4xf32>
    %145 = vector.shape_cast %144 : vector<1x8x4xf32> to vector<8x4xf32>
    %cst_95 = arith.constant dense<0.000000e+00> : vector<16x4xf32>
    %146 = tpu.matmul %10, %145, %cst_95 {dimension_numbers = #tpu.dot_dimension_numbers<[1], [0], [0], [1], [0, 0, 1, 1], [], []>} : vector<16x8xf32>, vector<8x4xf32>, vector<16x4xf32> -> vector<16x4xf32>
    %cst_96 = arith.constant dense<0.000000e+00> : vector<4x128xf32>
    %147 = tpu.matmul %12, %143, %cst_96 {dimension_numbers = #tpu.dot_dimension_numbers<[1], [0], [0], [1], [0, 0, 1, 1], [], []>} : vector<4x128xf32>, vector<128x128xf32>, vector<4x128xf32> -> vector<4x128xf32>
    %cst_97 = arith.constant dense<0.000000e+00> : vector<16x128xf32>
    %148 = tpu.matmul %146, %147, %cst_97 {dimension_numbers = #tpu.dot_dimension_numbers<[1], [0], [0], [1], [0, 0, 1, 1], [], []>} : vector<16x4xf32>, vector<4x128xf32>, vector<16x128xf32> -> vector<16x128xf32>
    %149 = arith.addf %130, %148 : vector<16x128xf32>
    %cst_98 = arith.constant dense<0.000000e+00> : vector<4x128xf32>
    %150 = tpu.matmul %14, %143, %cst_98 {dimension_numbers = #tpu.dot_dimension_numbers<[1], [0], [0], [1], [0, 0, 1, 1], [], []>} : vector<4x128xf32>, vector<128x128xf32>, vector<4x128xf32> -> vector<4x128xf32>
    %cst_99 = arith.constant dense<0.000000e+00> : vector<16x128xf32>
    %151 = tpu.matmul %146, %150, %cst_99 {dimension_numbers = #tpu.dot_dimension_numbers<[1], [0], [0], [1], [0, 0, 1, 1], [], []>} : vector<16x4xf32>, vector<4x128xf32>, vector<16x128xf32> -> vector<16x128xf32>
    %152 = arith.addf %133, %151 : vector<16x128xf32>
    %cst_100 = arith.constant dense<0.000000e+00> : vector<4x128xf32>
    %153 = tpu.matmul %16, %143, %cst_100 {dimension_numbers = #tpu.dot_dimension_numbers<[1], [0], [0], [1], [0, 0, 1, 1], [], []>} : vector<4x128xf32>, vector<128x128xf32>, vector<4x128xf32> -> vector<4x128xf32>
    %cst_101 = arith.constant dense<0.000000e+00> : vector<16x128xf32>
    %154 = tpu.matmul %146, %153, %cst_101 {dimension_numbers = #tpu.dot_dimension_numbers<[1], [0], [0], [1], [0, 0, 1, 1], [], []>} : vector<16x4xf32>, vector<4x128xf32>, vector<16x128xf32> -> vector<16x128xf32>
    %155 = arith.addf %136, %154 : vector<16x128xf32>
    %cst_102 = arith.constant dense<0.000000e+00> : vector<4x128xf32>
    %156 = tpu.matmul %18, %143, %cst_102 {dimension_numbers = #tpu.dot_dimension_numbers<[1], [0], [0], [1], [0, 0, 1, 1], [], []>} : vector<4x128xf32>, vector<128x128xf32>, vector<4x128xf32> -> vector<4x128xf32>
    %cst_103 = arith.constant dense<0.000000e+00> : vector<16x128xf32>
    %157 = tpu.matmul %146, %156, %cst_103 {dimension_numbers = #tpu.dot_dimension_numbers<[1], [0], [0], [1], [0, 0, 1, 1], [], []>} : vector<16x4xf32>, vector<4x128xf32>, vector<16x128xf32> -> vector<16x128xf32>
    %158 = arith.addf %139, %157 : vector<16x128xf32>
    %c0_104 = arith.constant 0 : index
    %159 = memref.load %arg1[%c0_104] : memref<4xi32, #tpu.memory_space<smem>>
    %c0_i32_105 = arith.constant 0 : i32
    %160 = arith.cmpi eq, %159, %c0_i32_105 : i32
    %161 = vector.extract_strided_slice %149 {offsets = [0, 0], sizes = [8, 128], strides = [1, 1]} : vector<16x128xf32> to vector<8x128xf32>
    %162 = vector.extract_strided_slice %149 {offsets = [8, 0], sizes = [8, 128], strides = [1, 1]} : vector<16x128xf32> to vector<8x128xf32>
    %163 = arith.select %160, %161, %162 : vector<8x128xf32>
    %cst_106 = arith.constant dense<0.000000e+00> : vector<8xf32>
    %164 = vector.multi_reduction <add>, %163, %cst_106 [1] : vector<8x128xf32> to vector<8xf32>
    %165 = vector.shape_cast %164 : vector<8xf32> to vector<8x1xf32>
    %cst_107 = arith.constant 1.280000e+02 : f32
    %166 = vector.broadcast %cst_107 : f32 to vector<8x1xf32>
    %167 = arith.divf %165, %166 : vector<8x1xf32>
    %168 = vector.broadcast %167 : vector<8x1xf32> to vector<8x128xf32>
    %169 = arith.subf %163, %168 : vector<8x128xf32>
    %cst_108 = arith.constant dense<0.000000e+00> : vector<8x8xf32>
    %170 = tpu.matmul %169, %169, %cst_108 {dimension_numbers = #tpu.dot_dimension_numbers<[1], [1], [0], [0], [0, 0, 1, 0], [], []>} : vector<8x128xf32>, vector<8x128xf32>, vector<8x8xf32> -> vector<8x8xf32>
    %cst_109 = arith.constant 0.00787401571 : f32
    %171 = vector.broadcast %cst_109 : f32 to vector<8x8xf32>
    %172 = arith.mulf %170, %171 : vector<8x8xf32>
    %173 = arith.addf %172, %3 : vector<8x8xf32>
    %c0_110 = arith.constant 0 : index
    %c0_111 = arith.constant 0 : index
    %174 = vector.load %arg6[%c0_110, %c0_111] : memref<32x8xf32, #tpu.memory_space<vmem>>, vector<8x8xf32>
    tpu.vector_store %arg6[%c0_110, %c0_111], %173 {strides = array<i32>} : memref<32x8xf32, #tpu.memory_space<vmem>>, vector<8x8xf32>,
    %c1_112 = arith.constant 1 : index
    %175 = memref.load %arg1[%c1_112] : memref<4xi32, #tpu.memory_space<smem>>
    %c0_i32_113 = arith.constant 0 : i32
    %176 = arith.cmpi eq, %175, %c0_i32_113 : i32
    %177 = vector.extract_strided_slice %152 {offsets = [0, 0], sizes = [8, 128], strides = [1, 1]} : vector<16x128xf32> to vector<8x128xf32>
    %178 = vector.extract_strided_slice %152 {offsets = [8, 0], sizes = [8, 128], strides = [1, 1]} : vector<16x128xf32> to vector<8x128xf32>
    %179 = arith.select %176, %177, %178 : vector<8x128xf32>
    %cst_114 = arith.constant dense<0.000000e+00> : vector<8xf32>
    %180 = vector.multi_reduction <add>, %179, %cst_114 [1] : vector<8x128xf32> to vector<8xf32>
    %181 = vector.shape_cast %180 : vector<8xf32> to vector<8x1xf32>
    %cst_115 = arith.constant 1.280000e+02 : f32
    %182 = vector.broadcast %cst_115 : f32 to vector<8x1xf32>
    %183 = arith.divf %181, %182 : vector<8x1xf32>
    %184 = vector.broadcast %183 : vector<8x1xf32> to vector<8x128xf32>
    %185 = arith.subf %179, %184 : vector<8x128xf32>
    %cst_116 = arith.constant dense<0.000000e+00> : vector<8x8xf32>
    %186 = tpu.matmul %185, %185, %cst_116 {dimension_numbers = #tpu.dot_dimension_numbers<[1], [1], [0], [0], [0, 0, 1, 0], [], []>} : vector<8x128xf32>, vector<8x128xf32>, vector<8x8xf32> -> vector<8x8xf32>
    %cst_117 = arith.constant 0.00787401571 : f32
    %187 = vector.broadcast %cst_117 : f32 to vector<8x8xf32>
    %188 = arith.mulf %186, %187 : vector<8x8xf32>
    %189 = arith.addf %188, %3 : vector<8x8xf32>
    %c8 = arith.constant 8 : index
    %c0_118 = arith.constant 0 : index
    %190 = vector.load %arg6[%c8, %c0_118] : memref<32x8xf32, #tpu.memory_space<vmem>>, vector<8x8xf32>
    tpu.vector_store %arg6[%c8, %c0_118], %189 {strides = array<i32>} : memref<32x8xf32, #tpu.memory_space<vmem>>, vector<8x8xf32>,
    %c2_119 = arith.constant 2 : index
    %191 = memref.load %arg1[%c2_119] : memref<4xi32, #tpu.memory_space<smem>>
    %c0_i32_120 = arith.constant 0 : i32
    %192 = arith.cmpi eq, %191, %c0_i32_120 : i32
    %193 = vector.extract_strided_slice %155 {offsets = [0, 0], sizes = [8, 128], strides = [1, 1]} : vector<16x128xf32> to vector<8x128xf32>
    %194 = vector.extract_strided_slice %155 {offsets = [8, 0], sizes = [8, 128], strides = [1, 1]} : vector<16x128xf32> to vector<8x128xf32>
    %195 = arith.select %192, %193, %194 : vector<8x128xf32>
    %cst_121 = arith.constant dense<0.000000e+00> : vector<8xf32>
    %196 = vector.multi_reduction <add>, %195, %cst_121 [1] : vector<8x128xf32> to vector<8xf32>
    %197 = vector.shape_cast %196 : vector<8xf32> to vector<8x1xf32>
    %cst_122 = arith.constant 1.280000e+02 : f32
    %198 = vector.broadcast %cst_122 : f32 to vector<8x1xf32>
    %199 = arith.divf %197, %198 : vector<8x1xf32>
    %200 = vector.broadcast %199 : vector<8x1xf32> to vector<8x128xf32>
    %201 = arith.subf %195, %200 : vector<8x128xf32>
    %cst_123 = arith.constant dense<0.000000e+00> : vector<8x8xf32>
    %202 = tpu.matmul %201, %201, %cst_123 {dimension_numbers = #tpu.dot_dimension_numbers<[1], [1], [0], [0], [0, 0, 1, 0], [], []>} : vector<8x128xf32>, vector<8x128xf32>, vector<8x8xf32> -> vector<8x8xf32>
    %cst_124 = arith.constant 0.00787401571 : f32
    %203 = vector.broadcast %cst_124 : f32 to vector<8x8xf32>
    %204 = arith.mulf %202, %203 : vector<8x8xf32>
    %205 = arith.addf %204, %3 : vector<8x8xf32>
    %c16 = arith.constant 16 : index
    %c0_125 = arith.constant 0 : index
    %206 = vector.load %arg6[%c16, %c0_125] : memref<32x8xf32, #tpu.memory_space<vmem>>, vector<8x8xf32>
    tpu.vector_store %arg6[%c16, %c0_125], %205 {strides = array<i32>} : memref<32x8xf32, #tpu.memory_space<vmem>>, vector<8x8xf32>,
    %c3_126 = arith.constant 3 : index
    %207 = memref.load %arg1[%c3_126] : memref<4xi32, #tpu.memory_space<smem>>
    %c0_i32_127 = arith.constant 0 : i32
    %208 = arith.cmpi eq, %207, %c0_i32_127 : i32
    %209 = vector.extract_strided_slice %158 {offsets = [0, 0], sizes = [8, 128], strides = [1, 1]} : vector<16x128xf32> to vector<8x128xf32>
    %210 = vector.extract_strided_slice %158 {offsets = [8, 0], sizes = [8, 128], strides = [1, 1]} : vector<16x128xf32> to vector<8x128xf32>
    %211 = arith.select %208, %209, %210 : vector<8x128xf32>
    %cst_128 = arith.constant dense<0.000000e+00> : vector<8xf32>
    %212 = vector.multi_reduction <add>, %211, %cst_128 [1] : vector<8x128xf32> to vector<8xf32>
    %213 = vector.shape_cast %212 : vector<8xf32> to vector<8x1xf32>
    %cst_129 = arith.constant 1.280000e+02 : f32
    %214 = vector.broadcast %cst_129 : f32 to vector<8x1xf32>
    %215 = arith.divf %213, %214 : vector<8x1xf32>
    %216 = vector.broadcast %215 : vector<8x1xf32> to vector<8x128xf32>
    %217 = arith.subf %211, %216 : vector<8x128xf32>
    %cst_130 = arith.constant dense<0.000000e+00> : vector<8x8xf32>
    %218 = tpu.matmul %217, %217, %cst_130 {dimension_numbers = #tpu.dot_dimension_numbers<[1], [1], [0], [0], [0, 0, 1, 0], [], []>} : vector<8x128xf32>, vector<8x128xf32>, vector<8x8xf32> -> vector<8x8xf32>
    %cst_131 = arith.constant 0.00787401571 : f32
    %219 = vector.broadcast %cst_131 : f32 to vector<8x8xf32>
    %220 = arith.mulf %218, %219 : vector<8x8xf32>
    %221 = arith.addf %220, %3 : vector<8x8xf32>
    %c24 = arith.constant 24 : index
    %c0_132 = arith.constant 0 : index
    %222 = vector.load %arg6[%c24, %c0_132] : memref<32x8xf32, #tpu.memory_space<vmem>>, vector<8x8xf32>
    tpu.vector_store %arg6[%c24, %c0_132], %221 {strides = array<i32>} : memref<32x8xf32, #tpu.memory_space<vmem>>, vector<8x8xf32>,
    return
  }
  func.func @transform_0(%arg0: i32, %arg1: memref<4xi32, #tpu.memory_space<smem>>) -> (i32, i32, i32) {
    %c0_i32 = arith.constant 0 : i32
    %c0_i32_0 = arith.constant 0 : i32
    %c0_i32_1 = arith.constant 0 : i32
    %c0_i32_2 = arith.constant 0 : i32
    return %c0_i32, %c0_i32_0, %c0_i32_1 : i32, i32, i32
  }
  func.func @transform_1(%arg0: i32, %arg1: memref<4xi32, #tpu.memory_space<smem>>) -> (i32, i32, i32) {
    %c0_i32 = arith.constant 0 : i32
    %c0_i32_0 = arith.constant 0 : i32
    %c0_i32_1 = arith.constant 0 : i32
    %c0_i32_2 = arith.constant 0 : i32
    return %c0_i32, %c0_i32_0, %c0_i32_1 : i32, i32, i32
  }
  func.func @transform_2(%arg0: i32, %arg1: memref<4xi32, #tpu.memory_space<smem>>) -> (i32, i32, i32) {
    %c0_i32 = arith.constant 0 : i32
    %c0_i32_0 = arith.constant 0 : i32
    %c0_i32_1 = arith.constant 0 : i32
    %c0_i32_2 = arith.constant 0 : i32
    return %c0_i32, %c0_i32_0, %c0_i32_1 : i32, i32, i32
  }
  func.func @transform_3(%arg0: i32, %arg1: memref<4xi32, #tpu.memory_space<smem>>) -> (i32, i32) {
    %c0_i32 = arith.constant 0 : i32
    %c0_i32_0 = arith.constant 0 : i32
    %c0_i32_1 = arith.constant 0 : i32
    return %c0_i32, %c0_i32_0 : i32, i32
  }
  func.func @transform_4(%arg0: i32, %arg1: memref<4xi32, #tpu.memory_space<smem>>) -> (i32, i32) {
    %c0_i32 = arith.constant 0 : i32
    %c0_i32_0 = arith.constant 0 : i32
    %c0_i32_1 = arith.constant 0 : i32
    return %c0_i32, %c0_i32_0 : i32, i32
  }
}

</mosaic_0001>

<llo_original>
// kernel: jade_forward.1
$region0: #{jade_forward.1}
  #allocation0 [shape = 'u32[]', space=smem, size = 0x4, offset = 0x4, fixed_abs, tag = 'smem constant byte address 0x4 - core index']
  #allocation1 [shape = 'u32[72,128]{1,0:T(1,128)}', space=vmem, size = 0x9000, scoped, tag = 'internal scratch']
  #allocation2 [shape = 's32[1]{0}', space=sflag, size = 0x4, scoped, tag = 'scoped memory for jade_forward.1']
  #allocation3 [shape = 'u8[512]{0}', space=smem, size = 0x200, scoped, tag = 'prefetched SMEM operand 0']
  %s0 = inlined_call_operand.vmem [shape: s32[4], index: 0, kind: input, shape index: {}]
  %s1 = inlined_call_operand.vmem [shape: f32[4,4,128], index: 1, kind: input, shape index: {}]
  %s2 = inlined_call_operand.vmem [shape: f32[7,8,4], index: 2, kind: input, shape index: {}]
  %s3 = inlined_call_operand.vmem [shape: f32[2,8,8], index: 3, kind: input, shape index: {}]
  %s4 = inlined_call_operand.vmem [shape: f32[8,8], index: 4, kind: input, shape index: {}]
  %s5 = inlined_call_operand.hbm [shape: f32[32,8], index: 5, kind: output, shape index: {}]
  %s6 = sld [smem:[#allocation0]]
  $region26: #{jade_forward.1} parent=0
    _
  %s8 = ssub.s32 1, %s6
  %s9 = scalar_select 0, %s8, %s6
  %s11 = sshll.u32 %s0, 4
  %s12 = int_to_ptr.vmem [resolvable:$true] %s11
  %14 = dma.vmem_to_smem %s12, 16, [#allocation3], [#allocation2]
  %16 = dma.done [#allocation2], 16
  %17 = sfence
  $region1: #{jade_forward.1} parent=0
    #allocation4 [shape = 'u8[16384]{0}', space=vmem, size = 0x4000, scoped, tag = 'output window, operand 0, single buffered']
    #allocation5 [shape = 's32[1]{0}', space=sflag, size = 0x4, scoped, tag = 'scoped memory for jade_forward.1']
    %18 = vsyncpa [#allocation5], 0
    // Predicated region
    $region2: #{jade_forward.1} parent=1 // pred_check
      _
    $region3: #{jade_forward.1} parent=1 // pred_check_branch
      %20 = sbr.rel (0) target = $region5
    $region4: #{jade_forward.1} parent=1 // pred_region
      _
    $region5: #{jade_forward.1} parent=1 // pred_fallthru
      _
    // Predicated region
    $region6: #{jade_forward.1} parent=1 // pred_check
      _
    $region7: #{jade_forward.1} parent=1 // pred_check_branch
      %22 = sbr.rel (0) target = $region9
    $region8: #{jade_forward.1} parent=1 // pred_region
      _
    $region9: #{jade_forward.1} parent=1 // pred_fallthru
      _
    // Predicated region
    $region10: #{jade_forward.1} parent=1 // pred_check
      _
    $region11: #{jade_forward.1} parent=1 // pred_check_branch
      %24 = sbr.rel (0) target = $region13
    $region12: #{jade_forward.1} parent=1 // pred_region
      _
    $region13: #{jade_forward.1} parent=1 // pred_fallthru
      _
    // Predicated region
    $region14: #{jade_forward.1} parent=1 // pred_check
      _
    $region15: #{jade_forward.1} parent=1 // pred_check_branch
      %26 = sbr.rel (0) target = $region17
    $region16: #{jade_forward.1} parent=1 // pred_region
      _
    $region17: #{jade_forward.1} parent=1 // pred_fallthru
      _
    %v27 = vld [vmem:[%s4] sm:$0xff]
    %vm28 = vcmask 64512
    %v30 = vsel %vm28, %v27, 0
    %32 = vmatpush.xpose.msra.mxu0 0.0
    %33 = vmatpush.xpose.msra.mxu0 0.0
    %34 = vmatpush.xpose.msra.mxu0 0.0
    %35 = vmatpush.xpose.msra.mxu0 0.0
    %36 = vmatpush.xpose.msra.mxu0 0.0
    %37 = vmatpush.xpose.msra.mxu0 0.0
    %38 = vmatpush.xpose.msra.mxu0 0.0
    %39 = vmatpush.xpose.msra.mxu0 0.0
    %40 = vmatpush.xpose.msra.mxu0 0.0
    %41 = vmatpush.xpose.msra.mxu0 0.0
    %42 = vmatpush.xpose.msra.mxu0 0.0
    %43 = vmatpush.xpose.msra.mxu0 0.0
    %44 = vmatpush.xpose.msra.mxu0 0.0
    %45 = vmatpush.xpose.msra.mxu0 0.0
    %46 = vmatpush.xpose.msra.mxu0 0.0
    %47 = vmatpush.xpose.msra.mxu0 %v30
    %48 = vmatmul.f32.gmra.mxu0 %v30
    %v49 = vpop.f32.mrf.mxu0
    %v50 = vadd.f32 0.0, %v49
    %51 = vdwg.mxu0
    %v52 = vmul.f32 %v50, 0.0001
    %v53 = vld [vmem:[%s3] sm:$0xff]
    %54 = vmatpush.msra.mxu0 0.0
    %55 = vmatpush.msra.mxu0 0.0
    %56 = vmatpush.msra.mxu0 0.0
    %57 = vmatpush.msra.mxu0 0.0
    %58 = vmatpush.msra.mxu0 0.0
    %59 = vmatpush.msra.mxu0 0.0
    %60 = vmatpush.msra.mxu0 0.0
    %61 = vmatpush.msra.mxu0 0.0
    %62 = vmatpush.msra.mxu0 0.0
    %63 = vmatpush.msra.mxu0 0.0
    %64 = vmatpush.msra.mxu0 0.0
    %65 = vmatpush.msra.mxu0 0.0
    %66 = vmatpush.msra.mxu0 0.0
    %67 = vmatpush.msra.mxu0 0.0
    %68 = vmatpush.msra.mxu0 0.0
    %69 = vmatpush.msra.mxu0 %v53
    %70 = vmatmul.f32.gmra.mxu0 %v30
    %v71 = vpop.f32.mrf.mxu0
    %v72 = vadd.f32 0.0, %v71
    %73 = vdwg.mxu0
    %s74 = scalar_lea.vmem %s3, 8
    %v75 = vld [vmem:[%s74] sm:$0xff]
    %76 = vmatpush.msra.mxu0 0.0
    %77 = vmatpush.msra.mxu0 0.0
    %78 = vmatpush.msra.mxu0 0.0
    %79 = vmatpush.msra.mxu0 0.0
    %80 = vmatpush.msra.mxu0 0.0
    %81 = vmatpush.msra.mxu0 0.0
    %82 = vmatpush.msra.mxu0 0.0
    %83 = vmatpush.msra.mxu0 0.0
    %84 = vmatpush.msra.mxu0 0.0
    %85 = vmatpush.msra.mxu0 0.0
    %86 = vmatpush.msra.mxu0 0.0
    %87 = vmatpush.msra.mxu0 0.0
    %88 = vmatpush.msra.mxu0 0.0
    %89 = vmatpush.msra.mxu0 0.0
    %90 = vmatpush.msra.mxu0 0.0
    %91 = vmatpush.msra.mxu0 %v75
    %92 = vmatmul.f32.gmra.mxu0 %v30
    %v93 = vpop.f32.mrf.mxu0
    %v94 = vadd.f32 0.0, %v93
    %95 = vdwg.mxu0
    %v96 = vld [vmem:[%s1] sm:$0xf]
    %s97 = scalar_lea.vmem %s1, 4
    %v98 = vld [vmem:[%s97] sm:$0xf]
    %s99 = scalar_lea.vmem %s1, 8
    %v100 = vld [vmem:[%s99] sm:$0xf]
    %s101 = scalar_lea.vmem %s1, 12
    %v102 = vld [vmem:[%s101] sm:$0xf]
    %v103 = vlaneseq
    %v104 = vshrl.u32 %v103, 7
    %v105 = vadd.s32 %v104, 8
    %v106 = vadd.s32 %v104, 16
    %v107 = vadd.s32 %v104, 24
    %v108 = vadd.s32 %v104, 32
    %v109 = vadd.s32 %v104, 40
    %v110 = vadd.s32 %v104, 48
    %v111 = vadd.s32 %v104, 56
    %v112 = vadd.s32 %v104, 64
    %v113 = vadd.s32 %v104, 72
    %v114 = vadd.s32 %v104, 80
    %v115 = vadd.s32 %v104, 88
    %v116 = vadd.s32 %v104, 96
    %v117 = vadd.s32 %v104, 104
    %v118 = vadd.s32 %v104, 112
    %v119 = vadd.s32 %v104, 120
    %v120 = vlaneseq
    %v121 = vand.u32 %v120, 127
    %v122 = vsub.s32 %v104, %v121
    %v123 = vsub.s32 %v105, %v121
    %v124 = vsub.s32 %v106, %v121
    %v125 = vsub.s32 %v107, %v121
    %v126 = vsub.s32 %v108, %v121
    %v127 = vsub.s32 %v109, %v121
    %v128 = vsub.s32 %v110, %v121
    %v129 = vsub.s32 %v111, %v121
    %v130 = vsub.s32 %v112, %v121
    %v131 = vsub.s32 %v113, %v121
    %v132 = vsub.s32 %v114, %v121
    %v133 = vsub.s32 %v115, %v121
    %v134 = vsub.s32 %v116, %v121
    %v135 = vsub.s32 %v117, %v121
    %v136 = vsub.s32 %v118, %v121
    %v137 = vsub.s32 %v119, %v121
    %vm138 = vcmp.eq.s32.totalorder %v122, 4294967293
    %vm139 = vcmp.eq.s32.totalorder %v123, 4294967293
    %vm140 = vcmp.eq.s32.totalorder %v124, 4294967293
    %vm141 = vcmp.eq.s32.totalorder %v125, 4294967293
    %vm142 = vcmp.eq.s32.totalorder %v126, 4294967293
    %vm143 = vcmp.eq.s32.totalorder %v127, 4294967293
    %vm144 = vcmp.eq.s32.totalorder %v128, 4294967293
    %vm145 = vcmp.eq.s32.totalorder %v129, 4294967293
    %vm146 = vcmp.eq.s32.totalorder %v130, 4294967293
    %vm147 = vcmp.eq.s32.totalorder %v131, 4294967293
    %vm148 = vcmp.eq.s32.totalorder %v132, 4294967293
    %vm149 = vcmp.eq.s32.totalorder %v133, 4294967293
    %vm150 = vcmp.eq.s32.totalorder %v134, 4294967293
    %vm151 = vcmp.eq.s32.totalorder %v135, 4294967293
    %vm152 = vcmp.eq.s32.totalorder %v136, 4294967293
    %vm153 = vcmp.eq.s32.totalorder %v137, 4294967293
    %v154 = vsel %vm138, 1, 0
    %v155 = vsel %vm139, 1, 0
    %v156 = vsel %vm140, 1, 0
    %v157 = vsel %vm141, 1, 0
    %v158 = vsel %vm142, 1, 0
    %v159 = vsel %vm143, 1, 0
    %v160 = vsel %vm144, 1, 0
    %v161 = vsel %vm145, 1, 0
    %v162 = vsel %vm146, 1, 0
    %v163 = vsel %vm147, 1, 0
    %v164 = vsel %vm148, 1, 0
    %v165 = vsel %vm149, 1, 0
    %v166 = vsel %vm150, 1, 0
    %v167 = vsel %vm151, 1, 0
    %v168 = vsel %vm152, 1, 0
    %v169 = vsel %vm153, 1, 0
    %v170 = vcvt.s32.f32 %v154
    %v171 = vcvt.s32.f32 %v155
    %v172 = vcvt.s32.f32 %v156
    %v173 = vcvt.s32.f32 %v157
    %v174 = vcvt.s32.f32 %v158
    %v175 = vcvt.s32.f32 %v159
    %v176 = vcvt.s32.f32 %v160
    %v177 = vcvt.s32.f32 %v161
    %v178 = vcvt.s32.f32 %v162
    %v179 = vcvt.s32.f32 %v163
    %v180 = vcvt.s32.f32 %v164
    %v181 = vcvt.s32.f32 %v165
    %v182 = vcvt.s32.f32 %v166
    %v183 = vcvt.s32.f32 %v167
    %v184 = vcvt.s32.f32 %v168
    %v185 = vcvt.s32.f32 %v169
    %v186 = vld [vmem:[%s2] sm:$0xff]
    %v188 = vsel %vm28, %v72, 0
    %v191 = vsel %vm28, %v94, 0
    %193 = vmatpush.msra.mxu0 0.0
    %194 = vmatpush.msra.mxu0 0.0
    %195 = vmatpush.msra.mxu0 0.0
    %196 = vmatpush.msra.mxu0 0.0
    %197 = vmatpush.msra.mxu0 0.0
    %198 = vmatpush.msra.mxu0 0.0
    %199 = vmatpush.msra.mxu0 0.0
    %200 = vmatpush.msra.mxu0 0.0
    %201 = vmatpush.msra.mxu0 0.0
    %202 = vmatpush.msra.mxu0 0.0
    %203 = vmatpush.msra.mxu0 0.0
    %204 = vmatpush.msra.mxu0 0.0
    %205 = vmatpush.msra.mxu0 0.0
    %206 = vmatpush.msra.mxu0 0.0
    %207 = vmatpush.msra.mxu0 0.0
    %208 = vmatpush.msra.mxu0 %v186
    %209 = vmatmul.f32.gmra.mxu0 %v188
    %v210 = vpop.f32.mrf.mxu0
    %v211 = vadd.f32 0.0, %v210
    %212 = vmatmul.f32.gmra.mxu0 %v191
    %v213 = vpop.f32.mrf.mxu0
    %v214 = vadd.f32 0.0, %v213
    %215 = vdwg.mxu0
    %216 = vmatpush.msra.mxu0 %v185
    %217 = vmatpush.msra.mxu0 %v184
    %218 = vmatpush.msra.mxu0 %v183
    %219 = vmatpush.msra.mxu0 %v182
    %220 = vmatpush.msra.mxu0 %v181
    %221 = vmatpush.msra.mxu0 %v180
    %222 = vmatpush.msra.mxu0 %v179
    %223 = vmatpush.msra.mxu0 %v178
    %224 = vmatpush.msra.mxu0 %v177
    %225 = vmatpush.msra.mxu0 %v176
    %226 = vmatpush.msra.mxu0 %v175
    %227 = vmatpush.msra.mxu0 %v174
    %228 = vmatpush.msra.mxu0 %v173
    %229 = vmatpush.msra.mxu0 %v172
    %230 = vmatpush.msra.mxu0 %v171
    %231 = vmatpush.msra.mxu0 %v170
    %232 = vmatmul.f32.gmra.mxu0 %v96
    %v233 = vpop.f32.mrf.mxu0
    %v234 = vadd.f32 0.0, %v233
    %235 = vdwg.mxu0
    %236 = vmatpush.msra.mxu0 %v185
    %237 = vmatpush.msra.mxu0 %v184
    %238 = vmatpush.msra.mxu0 %v183
    %239 = vmatpush.msra.mxu0 %v182
    %240 = vmatpush.msra.mxu0 %v181
    %241 = vmatpush.msra.mxu0 %v180
    %242 = vmatpush.msra.mxu0 %v179
    %243 = vmatpush.msra.mxu0 %v178
    %244 = vmatpush.msra.mxu0 %v177
    %245 = vmatpush.msra.mxu0 %v176
    %246 = vmatpush.msra.mxu0 %v175
    %247 = vmatpush.msra.mxu0 %v174
    %248 = vmatpush.msra.mxu0 %v173
    %249 = vmatpush.msra.mxu0 %v172
    %250 = vmatpush.msra.mxu0 %v171
    %251 = vmatpush.msra.mxu0 %v170
    %252 = vmatmul.f32.gmra.mxu0 %v98
    %v253 = vpop.f32.mrf.mxu0
    %v254 = vadd.f32 0.0, %v253
    %255 = vdwg.mxu0
    %256 = vmatpush.msra.mxu0 %v185
    %257 = vmatpush.msra.mxu0 %v184
    %258 = vmatpush.msra.mxu0 %v183
    %259 = vmatpush.msra.mxu0 %v182
    %260 = vmatpush.msra.mxu0 %v181
    %261 = vmatpush.msra.mxu0 %v180
    %262 = vmatpush.msra.mxu0 %v179
    %263 = vmatpush.msra.mxu0 %v178
    %264 = vmatpush.msra.mxu0 %v177
    %265 = vmatpush.msra.mxu0 %v176
    %266 = vmatpush.msra.mxu0 %v175
    %267 = vmatpush.msra.mxu0 %v174
    %268 = vmatpush.msra.mxu0 %v173
    %269 = vmatpush.msra.mxu0 %v172
    %270 = vmatpush.msra.mxu0 %v171
    %271 = vmatpush.msra.mxu0 %v170
    %272 = vmatmul.f32.gmra.mxu0 %v100
    %v273 = vpop.f32.mrf.mxu0
    %v274 = vadd.f32 0.0, %v273
    %275 = vdwg.mxu0
    %276 = vmatpush.msra.mxu0 %v185
    %277 = vmatpush.msra.mxu0 %v184
    %278 = vmatpush.msra.mxu0 %v183
    %279 = vmatpush.msra.mxu0 %v182
    %280 = vmatpush.msra.mxu0 %v181
    %281 = vmatpush.msra.mxu0 %v180
    %282 = vmatpush.msra.mxu0 %v179
    %283 = vmatpush.msra.mxu0 %v178
    %284 = vmatpush.msra.mxu0 %v177
    %285 = vmatpush.msra.mxu0 %v176
    %286 = vmatpush.msra.mxu0 %v175
    %287 = vmatpush.msra.mxu0 %v174
    %288 = vmatpush.msra.mxu0 %v173
    %289 = vmatpush.msra.mxu0 %v172
    %290 = vmatpush.msra.mxu0 %v171
    %291 = vmatpush.msra.mxu0 %v170
    %292 = vmatmul.f32.gmra.mxu0 %v102
    %v293 = vpop.f32.mrf.mxu0
    %v294 = vadd.f32 0.0, %v293
    %295 = vdwg.mxu0
    %vm296 = vcmp.eq.s32.totalorder %v122, 4294967294
    %vm297 = vcmp.eq.s32.totalorder %v123, 4294967294
    %vm298 = vcmp.eq.s32.totalorder %v124, 4294967294
    %vm299 = vcmp.eq.s32.totalorder %v125, 4294967294
    %vm300 = vcmp.eq.s32.totalorder %v126, 4294967294
    %vm301 = vcmp.eq.s32.totalorder %v127, 4294967294
    %vm302 = vcmp.eq.s32.totalorder %v128, 4294967294
    %vm303 = vcmp.eq.s32.totalorder %v129, 4294967294
    %vm304 = vcmp.eq.s32.totalorder %v130, 4294967294
    %vm305 = vcmp.eq.s32.totalorder %v131, 4294967294
    %vm306 = vcmp.eq.s32.totalorder %v132, 4294967294
    %vm307 = vcmp.eq.s32.totalorder %v133, 4294967294
    %vm308 = vcmp.eq.s32.totalorder %v134, 4294967294
    %vm309 = vcmp.eq.s32.totalorder %v135, 4294967294
    %vm310 = vcmp.eq.s32.totalorder %v136, 4294967294
    %vm311 = vcmp.eq.s32.totalorder %v137, 4294967294
    %v312 = vsel %vm296, 1, 0
    %v313 = vsel %vm297, 1, 0
    %v314 = vsel %vm298, 1, 0
    %v315 = vsel %vm299, 1, 0
    %v316 = vsel %vm300, 1, 0
    %v317 = vsel %vm301, 1, 0
    %v318 = vsel %vm302, 1, 0
    %v319 = vsel %vm303, 1, 0
    %v320 = vsel %vm304, 1, 0
    %v321 = vsel %vm305, 1, 0
    %v322 = vsel %vm306, 1, 0
    %v323 = vsel %vm307, 1, 0
    %v324 = vsel %vm308, 1, 0
    %v325 = vsel %vm309, 1, 0
    %v326 = vsel %vm310, 1, 0
    %v327 = vsel %vm311, 1, 0
    %v328 = vcvt.s32.f32 %v312
    %v329 = vcvt.s32.f32 %v313
    %v330 = vcvt.s32.f32 %v314
    %v331 = vcvt.s32.f32 %v315
    %v332 = vcvt.s32.f32 %v316
    %v333 = vcvt.s32.f32 %v317
    %v334 = vcvt.s32.f32 %v318
    %v335 = vcvt.s32.f32 %v319
    %v336 = vcvt.s32.f32 %v320
    %v337 = vcvt.s32.f32 %v321
    %v338 = vcvt.s32.f32 %v322
    %v339 = vcvt.s32.f32 %v323
    %v340 = vcvt.s32.f32 %v324
    %v341 = vcvt.s32.f32 %v325
    %v342 = vcvt.s32.f32 %v326
    %v343 = vcvt.s32.f32 %v327
    %s344 = scalar_lea.vmem %s2, 8
    %v345 = vld [vmem:[%s344] sm:$0xff]
    %346 = vmatpush.msra.mxu0 0.0
    %347 = vmatpush.msra.mxu0 0.0
    %348 = vmatpush.msra.mxu0 0.0
    %349 = vmatpush.msra.mxu0 0.0
    %350 = vmatpush.msra.mxu0 0.0
    %351 = vmatpush.msra.mxu0 0.0
    %352 = vmatpush.msra.mxu0 0.0
    %353 = vmatpush.msra.mxu0 0.0
    %354 = vmatpush.msra.mxu0 0.0
    %355 = vmatpush.msra.mxu0 0.0
    %356 = vmatpush.msra.mxu0 0.0
    %357 = vmatpush.msra.mxu0 0.0
    %358 = vmatpush.msra.mxu0 0.0
    %359 = vmatpush.msra.mxu0 0.0
    %360 = vmatpush.msra.mxu0 0.0
    %361 = vmatpush.msra.mxu0 %v345
    %362 = vmatmul.f32.gmra.mxu0 %v188
    %v363 = vpop.f32.mrf.mxu0
    %v364 = vadd.f32 0.0, %v363
    %365 = vmatmul.f32.gmra.mxu0 %v191
    %v366 = vpop.f32.mrf.mxu0
    %v367 = vadd.f32 0.0, %v366
    %368 = vdwg.mxu0
    %369 = vmatpush.msra.mxu0 %v343
    %370 = vmatpush.msra.mxu0 %v342
    %371 = vmatpush.msra.mxu0 %v341
    %372 = vmatpush.msra.mxu0 %v340
    %373 = vmatpush.msra.mxu0 %v339
    %374 = vmatpush.msra.mxu0 %v338
    %375 = vmatpush.msra.mxu0 %v337
    %376 = vmatpush.msra.mxu0 %v336
    %377 = vmatpush.msra.mxu0 %v335
    %378 = vmatpush.msra.mxu0 %v334
    %379 = vmatpush.msra.mxu0 %v333
    %380 = vmatpush.msra.mxu0 %v332
    %381 = vmatpush.msra.mxu0 %v331
    %382 = vmatpush.msra.mxu0 %v330
    %383 = vmatpush.msra.mxu0 %v329
    %384 = vmatpush.msra.mxu0 %v328
    %385 = vmatmul.f32.gmra.mxu0 %v96
    %v386 = vpop.f32.mrf.mxu0
    %v387 = vadd.f32 0.0, %v386
    %388 = vdwg.mxu0
    %vm389 = vcmask 31744
    %v391 = vsel %vm389, %v364, 0
    %v394 = vsel %vm389, %v367, 0
    %vm396 = vcmask 1043456
    %v398 = vsel %vm396, %v387, 0
    %400 = vmatpush.msra.mxu0 0.0
    %401 = vmatpush.msra.mxu0 0.0
    %402 = vmatpush.msra.mxu0 0.0
    %403 = vmatpush.msra.mxu0 0.0
    %404 = vmatpush.msra.mxu0 0.0
    %405 = vmatpush.msra.mxu0 0.0
    %406 = vmatpush.msra.mxu0 0.0
    %407 = vmatpush.msra.mxu0 0.0
    %408 = vmatpush.msra.mxu0 0.0
    %409 = vmatpush.msra.mxu0 0.0
    %410 = vmatpush.msra.mxu0 0.0
    %411 = vmatpush.msra.mxu0 0.0
    %412 = vmatpush.msra.mxu0 0.0
    %413 = vmatpush.msra.mxu0 0.0
    %414 = vmatpush.msra.mxu0 0.0
    %415 = vmatpush.msra.mxu0 %v398
    %416 = vmatmul.f32.gmra.mxu0 %v391
    %v417 = vpop.f32.mrf.mxu0
    %v418 = vadd.f32 0.0, %v417
    %419 = vmatmul.f32.gmra.mxu0 %v394
    %v420 = vpop.f32.mrf.mxu0
    %v421 = vadd.f32 0.0, %v420
    %422 = vdwg.mxu0
    %v424 = vsel %vm389, %v211, 0
    %v427 = vsel %vm389, %v214, 0
    %v430 = vsel %vm396, %v234, 0
    %432 = vmatpush.msra.mxu0 0.0
    %433 = vmatpush.msra.mxu0 0.0
    %434 = vmatpush.msra.mxu0 0.0
    %435 = vmatpush.msra.mxu0 0.0
    %436 = vmatpush.msra.mxu0 0.0
    %437 = vmatpush.msra.mxu0 0.0
    %438 = vmatpush.msra.mxu0 0.0
    %439 = vmatpush.msra.mxu0 0.0
    %440 = vmatpush.msra.mxu0 0.0
    %441 = vmatpush.msra.mxu0 0.0
    %442 = vmatpush.msra.mxu0 0.0
    %443 = vmatpush.msra.mxu0 0.0
    %444 = vmatpush.msra.mxu0 0.0
    %445 = vmatpush.msra.mxu0 0.0
    %446 = vmatpush.msra.mxu0 0.0
    %447 = vmatpush.msra.mxu0 %v430
    %448 = vmatmul.f32.gmra.mxu0 %v424
    %v449 = vpop.f32.mrf.mxu0
    %v450 = vadd.f32 %v418, %v449
    %451 = vmatmul.f32.gmra.mxu0 %v427
    %v452 = vpop.f32.mrf.mxu0
    %v453 = vadd.f32 %v421, %v452
    %454 = vdwg.mxu0
    %455 = vmatpush.msra.mxu0 %v343
    %456 = vmatpush.msra.mxu0 %v342
    %457 = vmatpush.msra.mxu0 %v341
    %458 = vmatpush.msra.mxu0 %v340
    %459 = vmatpush.msra.mxu0 %v339
    %460 = vmatpush.msra.mxu0 %v338
    %461 = vmatpush.msra.mxu0 %v337
    %462 = vmatpush.msra.mxu0 %v336
    %463 = vmatpush.msra.mxu0 %v335
    %464 = vmatpush.msra.mxu0 %v334
    %465 = vmatpush.msra.mxu0 %v333
    %466 = vmatpush.msra.mxu0 %v332
    %467 = vmatpush.msra.mxu0 %v331
    %468 = vmatpush.msra.mxu0 %v330
    %469 = vmatpush.msra.mxu0 %v329
    %470 = vmatpush.msra.mxu0 %v328
    %471 = vmatmul.f32.gmra.mxu0 %v98
    %v472 = vpop.f32.mrf.mxu0
    %v473 = vadd.f32 0.0, %v472
    %474 = vdwg.mxu0
    %v476 = vsel %vm396, %v473, 0
    %478 = vmatpush.msra.mxu0 0.0
    %479 = vmatpush.msra.mxu0 0.0
    %480 = vmatpush.msra.mxu0 0.0
    %481 = vmatpush.msra.mxu0 0.0
    %482 = vmatpush.msra.mxu0 0.0
    %483 = vmatpush.msra.mxu0 0.0
    %484 = vmatpush.msra.mxu0 0.0
    %485 = vmatpush.msra.mxu0 0.0
    %486 = vmatpush.msra.mxu0 0.0
    %487 = vmatpush.msra.mxu0 0.0
    %488 = vmatpush.msra.mxu0 0.0
    %489 = vmatpush.msra.mxu0 0.0
    %490 = vmatpush.msra.mxu0 0.0
    %491 = vmatpush.msra.mxu0 0.0
    %492 = vmatpush.msra.mxu0 0.0
    %493 = vmatpush.msra.mxu0 %v476
    %494 = vmatmul.f32.gmra.mxu0 %v391
    %v495 = vpop.f32.mrf.mxu0
    %v496 = vadd.f32 0.0, %v495
    %497 = vmatmul.f32.gmra.mxu0 %v394
    %v498 = vpop.f32.mrf.mxu0
    %v499 = vadd.f32 0.0, %v498
    %500 = vdwg.mxu0
    %v502 = vsel %vm396, %v254, 0
    %504 = vmatpush.msra.mxu0 0.0
    %505 = vmatpush.msra.mxu0 0.0
    %506 = vmatpush.msra.mxu0 0.0
    %507 = vmatpush.msra.mxu0 0.0
    %508 = vmatpush.msra.mxu0 0.0
    %509 = vmatpush.msra.mxu0 0.0
    %510 = vmatpush.msra.mxu0 0.0
    %511 = vmatpush.msra.mxu0 0.0
    %512 = vmatpush.msra.mxu0 0.0
    %513 = vmatpush.msra.mxu0 0.0
    %514 = vmatpush.msra.mxu0 0.0
    %515 = vmatpush.msra.mxu0 0.0
    %516 = vmatpush.msra.mxu0 0.0
    %517 = vmatpush.msra.mxu0 0.0
    %518 = vmatpush.msra.mxu0 0.0
    %519 = vmatpush.msra.mxu0 %v502
    %520 = vmatmul.f32.gmra.mxu0 %v424
    %v521 = vpop.f32.mrf.mxu0
    %v522 = vadd.f32 %v496, %v521
    %523 = vmatmul.f32.gmra.mxu0 %v427
    %v524 = vpop.f32.mrf.mxu0
    %v525 = vadd.f32 %v499, %v524
    %526 = vdwg.mxu0
    %527 = vmatpush.msra.mxu0 %v343
    %528 = vmatpush.msra.mxu0 %v342
    %529 = vmatpush.msra.mxu0 %v341
    %530 = vmatpush.msra.mxu0 %v340
    %531 = vmatpush.msra.mxu0 %v339
    %532 = vmatpush.msra.mxu0 %v338
    %533 = vmatpush.msra.mxu0 %v337
    %534 = vmatpush.msra.mxu0 %v336
    %535 = vmatpush.msra.mxu0 %v335
    %536 = vmatpush.msra.mxu0 %v334
    %537 = vmatpush.msra.mxu0 %v333
    %538 = vmatpush.msra.mxu0 %v332
    %539 = vmatpush.msra.mxu0 %v331
    %540 = vmatpush.msra.mxu0 %v330
    %541 = vmatpush.msra.mxu0 %v329
    %542 = vmatpush.msra.mxu0 %v328
    %543 = vmatmul.f32.gmra.mxu0 %v100
    %v544 = vpop.f32.mrf.mxu0
    %v545 = vadd.f32 0.0, %v544
    %546 = vdwg.mxu0
    %v548 = vsel %vm396, %v545, 0
    %550 = vmatpush.msra.mxu0 0.0
    %551 = vmatpush.msra.mxu0 0.0
    %552 = vmatpush.msra.mxu0 0.0
    %553 = vmatpush.msra.mxu0 0.0
    %554 = vmatpush.msra.mxu0 0.0
    %555 = vmatpush.msra.mxu0 0.0
    %556 = vmatpush.msra.mxu0 0.0
    %557 = vmatpush.msra.mxu0 0.0
    %558 = vmatpush.msra.mxu0 0.0
    %559 = vmatpush.msra.mxu0 0.0
    %560 = vmatpush.msra.mxu0 0.0
    %561 = vmatpush.msra.mxu0 0.0
    %562 = vmatpush.msra.mxu0 0.0
    %563 = vmatpush.msra.mxu0 0.0
    %564 = vmatpush.msra.mxu0 0.0
    %565 = vmatpush.msra.mxu0 %v548
    %566 = vmatmul.f32.gmra.mxu0 %v391
    %v567 = vpop.f32.mrf.mxu0
    %v568 = vadd.f32 0.0, %v567
    %569 = vmatmul.f32.gmra.mxu0 %v394
    %v570 = vpop.f32.mrf.mxu0
    %v571 = vadd.f32 0.0, %v570
    %572 = vdwg.mxu0
    %v574 = vsel %vm396, %v274, 0
    %576 = vmatpush.msra.mxu0 0.0
    %577 = vmatpush.msra.mxu0 0.0
    %578 = vmatpush.msra.mxu0 0.0
    %579 = vmatpush.msra.mxu0 0.0
    %580 = vmatpush.msra.mxu0 0.0
    %581 = vmatpush.msra.mxu0 0.0
    %582 = vmatpush.msra.mxu0 0.0
    %583 = vmatpush.msra.mxu0 0.0
    %584 = vmatpush.msra.mxu0 0.0
    %585 = vmatpush.msra.mxu0 0.0
    %586 = vmatpush.msra.mxu0 0.0
    %587 = vmatpush.msra.mxu0 0.0
    %588 = vmatpush.msra.mxu0 0.0
    %589 = vmatpush.msra.mxu0 0.0
    %590 = vmatpush.msra.mxu0 0.0
    %591 = vmatpush.msra.mxu0 %v574
    %592 = vmatmul.f32.gmra.mxu0 %v424
    %v593 = vpop.f32.mrf.mxu0
    %v594 = vadd.f32 %v568, %v593
    %595 = vmatmul.f32.gmra.mxu0 %v427
    %v596 = vpop.f32.mrf.mxu0
    %v597 = vadd.f32 %v571, %v596
    %598 = vdwg.mxu0
    %599 = vmatpush.msra.mxu0 %v343
    %600 = vmatpush.msra.mxu0 %v342
    %601 = vmatpush.msra.mxu0 %v341
    %602 = vmatpush.msra.mxu0 %v340
    %603 = vmatpush.msra.mxu0 %v339
    %604 = vmatpush.msra.mxu0 %v338
    %605 = vmatpush.msra.mxu0 %v337
    %606 = vmatpush.msra.mxu0 %v336
    %607 = vmatpush.msra.mxu0 %v335
    %608 = vmatpush.msra.mxu0 %v334
    %609 = vmatpush.msra.mxu0 %v333
    %610 = vmatpush.msra.mxu0 %v332
    %611 = vmatpush.msra.mxu0 %v331
    %612 = vmatpush.msra.mxu0 %v330
    %613 = vmatpush.msra.mxu0 %v329
    %614 = vmatpush.msra.mxu0 %v328
    %615 = vmatmul.f32.gmra.mxu0 %v102
    %v616 = vpop.f32.mrf.mxu0
    %v617 = vadd.f32 0.0, %v616
    %618 = vdwg.mxu0
    %v620 = vsel %vm396, %v617, 0
    %622 = vmatpush.msra.mxu0 0.0
    %623 = vmatpush.msra.mxu0 0.0
    %624 = vmatpush.msra.mxu0 0.0
    %625 = vmatpush.msra.mxu0 0.0
    %626 = vmatpush.msra.mxu0 0.0
    %627 = vmatpush.msra.mxu0 0.0
    %628 = vmatpush.msra.mxu0 0.0
    %629 = vmatpush.msra.mxu0 0.0
    %630 = vmatpush.msra.mxu0 0.0
    %631 = vmatpush.msra.mxu0 0.0
    %632 = vmatpush.msra.mxu0 0.0
    %633 = vmatpush.msra.mxu0 0.0
    %634 = vmatpush.msra.mxu0 0.0
    %635 = vmatpush.msra.mxu0 0.0
    %636 = vmatpush.msra.mxu0 0.0
    %637 = vmatpush.msra.mxu0 %v620
    %638 = vmatmul.f32.gmra.mxu0 %v391
    %v639 = vpop.f32.mrf.mxu0
    %v640 = vadd.f32 0.0, %v639
    %641 = vmatmul.f32.gmra.mxu0 %v394
    %v642 = vpop.f32.mrf.mxu0
    %v643 = vadd.f32 0.0, %v642
    %644 = vdwg.mxu0
    %v646 = vsel %vm396, %v294, 0
    %648 = vmatpush.msra.mxu0 0.0
    %649 = vmatpush.msra.mxu0 0.0
    %650 = vmatpush.msra.mxu0 0.0
    %651 = vmatpush.msra.mxu0 0.0
    %652 = vmatpush.msra.mxu0 0.0
    %653 = vmatpush.msra.mxu0 0.0
    %654 = vmatpush.msra.mxu0 0.0
    %655 = vmatpush.msra.mxu0 0.0
    %656 = vmatpush.msra.mxu0 0.0
    %657 = vmatpush.msra.mxu0 0.0
    %658 = vmatpush.msra.mxu0 0.0
    %659 = vmatpush.msra.mxu0 0.0
    %660 = vmatpush.msra.mxu0 0.0
    %661 = vmatpush.msra.mxu0 0.0
    %662 = vmatpush.msra.mxu0 0.0
    %663 = vmatpush.msra.mxu0 %v646
    %664 = vmatmul.f32.gmra.mxu0 %v424
    %v665 = vpop.f32.mrf.mxu0
    %v666 = vadd.f32 %v640, %v665
    %667 = vmatmul.f32.gmra.mxu0 %v427
    %v668 = vpop.f32.mrf.mxu0
    %v669 = vadd.f32 %v643, %v668
    %670 = vdwg.mxu0
    %vm671 = vcmp.eq.s32.totalorder %v122, 4294967295
    %vm672 = vcmp.eq.s32.totalorder %v123, 4294967295
    %vm673 = vcmp.eq.s32.totalorder %v124, 4294967295
    %vm674 = vcmp.eq.s32.totalorder %v125, 4294967295
    %vm675 = vcmp.eq.s32.totalorder %v126, 4294967295
    %vm676 = vcmp.eq.s32.totalorder %v127, 4294967295
    %vm677 = vcmp.eq.s32.totalorder %v128, 4294967295
    %vm678 = vcmp.eq.s32.totalorder %v129, 4294967295
    %vm679 = vcmp.eq.s32.totalorder %v130, 4294967295
    %vm680 = vcmp.eq.s32.totalorder %v131, 4294967295
    %vm681 = vcmp.eq.s32.totalorder %v132, 4294967295
    %vm682 = vcmp.eq.s32.totalorder %v133, 4294967295
    %vm683 = vcmp.eq.s32.totalorder %v134, 4294967295
    %vm684 = vcmp.eq.s32.totalorder %v135, 4294967295
    %vm685 = vcmp.eq.s32.totalorder %v136, 4294967295
    %vm686 = vcmp.eq.s32.totalorder %v137, 4294967295
    %v687 = vsel %vm671, 1, 0
    %v688 = vsel %vm672, 1, 0
    %v689 = vsel %vm673, 1, 0
    %v690 = vsel %vm674, 1, 0
    %v691 = vsel %vm675, 1, 0
    %v692 = vsel %vm676, 1, 0
    %v693 = vsel %vm677, 1, 0
    %v694 = vsel %vm678, 1, 0
    %v695 = vsel %vm679, 1, 0
    %v696 = vsel %vm680, 1, 0
    %v697 = vsel %vm681, 1, 0
    %v698 = vsel %vm682, 1, 0
    %v699 = vsel %vm683, 1, 0
    %v700 = vsel %vm684, 1, 0
    %v701 = vsel %vm685, 1, 0
    %v702 = vsel %vm686, 1, 0
    %v703 = vcvt.s32.f32 %v687
    %v704 = vcvt.s32.f32 %v688
    %v705 = vcvt.s32.f32 %v689
    %v706 = vcvt.s32.f32 %v690
    %v707 = vcvt.s32.f32 %v691
    %v708 = vcvt.s32.f32 %v692
    %v709 = vcvt.s32.f32 %v693
    %v710 = vcvt.s32.f32 %v694
    %v711 = vcvt.s32.f32 %v695
    %v712 = vcvt.s32.f32 %v696
    %v713 = vcvt.s32.f32 %v697
    %v714 = vcvt.s32.f32 %v698
    %v715 = vcvt.s32.f32 %v699
    %v716 = vcvt.s32.f32 %v700
    %v717 = vcvt.s32.f32 %v701
    %v718 = vcvt.s32.f32 %v702
    %s719 = scalar_lea.vmem %s2, 16
    %v720 = vld [vmem:[%s719] sm:$0xff]
    %721 = vmatpush.msra.mxu0 0.0
    %722 = vmatpush.msra.mxu0 0.0
    %723 = vmatpush.msra.mxu0 0.0
    %724 = vmatpush.msra.mxu0 0.0
    %725 = vmatpush.msra.mxu0 0.0
    %726 = vmatpush.msra.mxu0 0.0
    %727 = vmatpush.msra.mxu0 0.0
    %728 = vmatpush.msra.mxu0 0.0
    %729 = vmatpush.msra.mxu0 0.0
    %730 = vmatpush.msra.mxu0 0.0
    %731 = vmatpush.msra.mxu0 0.0
    %732 = vmatpush.msra.mxu0 0.0
    %733 = vmatpush.msra.mxu0 0.0
    %734 = vmatpush.msra.mxu0 0.0
    %735 = vmatpush.msra.mxu0 0.0
    %736 = vmatpush.msra.mxu0 %v720
    %737 = vmatmul.f32.gmra.mxu0 %v188
    %v738 = vpop.f32.mrf.mxu0
    %v739 = vadd.f32 0.0, %v738
    %740 = vmatmul.f32.gmra.mxu0 %v191
    %v741 = vpop.f32.mrf.mxu0
    %v742 = vadd.f32 0.0, %v741
    %743 = vdwg.mxu0
    %744 = vmatpush.msra.mxu0 %v718
    %745 = vmatpush.msra.mxu0 %v717
    %746 = vmatpush.msra.mxu0 %v716
    %747 = vmatpush.msra.mxu0 %v715
    %748 = vmatpush.msra.mxu0 %v714
    %749 = vmatpush.msra.mxu0 %v713
    %750 = vmatpush.msra.mxu0 %v712
    %751 = vmatpush.msra.mxu0 %v711
    %752 = vmatpush.msra.mxu0 %v710
    %753 = vmatpush.msra.mxu0 %v709
    %754 = vmatpush.msra.mxu0 %v708
    %755 = vmatpush.msra.mxu0 %v707
    %756 = vmatpush.msra.mxu0 %v706
    %757 = vmatpush.msra.mxu0 %v705
    %758 = vmatpush.msra.mxu0 %v704
    %759 = vmatpush.msra.mxu0 %v703
    %760 = vmatmul.f32.gmra.mxu0 %v96
    %v761 = vpop.f32.mrf.mxu0
    %v762 = vadd.f32 0.0, %v761
    %763 = vdwg.mxu0
    %v765 = vsel %vm389, %v739, 0
    %v768 = vsel %vm389, %v742, 0
    %v771 = vsel %vm396, %v762, 0
    %773 = vmatpush.msra.mxu0 0.0
    %774 = vmatpush.msra.mxu0 0.0
    %775 = vmatpush.msra.mxu0 0.0
    %776 = vmatpush.msra.mxu0 0.0
    %777 = vmatpush.msra.mxu0 0.0
    %778 = vmatpush.msra.mxu0 0.0
    %779 = vmatpush.msra.mxu0 0.0
    %780 = vmatpush.msra.mxu0 0.0
    %781 = vmatpush.msra.mxu0 0.0
    %782 = vmatpush.msra.mxu0 0.0
    %783 = vmatpush.msra.mxu0 0.0
    %784 = vmatpush.msra.mxu0 0.0
    %785 = vmatpush.msra.mxu0 0.0
    %786 = vmatpush.msra.mxu0 0.0
    %787 = vmatpush.msra.mxu0 0.0
    %788 = vmatpush.msra.mxu0 %v771
    %789 = vmatmul.f32.gmra.mxu0 %v765
    %v790 = vpop.f32.mrf.mxu0
    %v791 = vadd.f32 0.0, %v790
    %792 = vmatmul.f32.gmra.mxu0 %v768
    %v793 = vpop.f32.mrf.mxu0
    %v794 = vadd.f32 0.0, %v793
    %795 = vdwg.mxu0
    %v796 = vadd.f32 %v450, %v791
    %v797 = vadd.f32 %v453, %v794
    %798 = vmatpush.msra.mxu0 %v718
    %799 = vmatpush.msra.mxu0 %v717
    %800 = vmatpush.msra.mxu0 %v716
    %801 = vmatpush.msra.mxu0 %v715
    %802 = vmatpush.msra.mxu0 %v714
    %803 = vmatpush.msra.mxu0 %v713
    %804 = vmatpush.msra.mxu0 %v712
    %805 = vmatpush.msra.mxu0 %v711
    %806 = vmatpush.msra.mxu0 %v710
    %807 = vmatpush.msra.mxu0 %v709
    %808 = vmatpush.msra.mxu0 %v708
    %809 = vmatpush.msra.mxu0 %v707
    %810 = vmatpush.msra.mxu0 %v706
    %811 = vmatpush.msra.mxu0 %v705
    %812 = vmatpush.msra.mxu0 %v704
    %813 = vmatpush.msra.mxu0 %v703
    %814 = vmatmul.f32.gmra.mxu0 %v98
    %v815 = vpop.f32.mrf.mxu0
    %v816 = vadd.f32 0.0, %v815
    %817 = vdwg.mxu0
    %v819 = vsel %vm396, %v816, 0
    %821 = vmatpush.msra.mxu0 0.0
    %822 = vmatpush.msra.mxu0 0.0
    %823 = vmatpush.msra.mxu0 0.0
    %824 = vmatpush.msra.mxu0 0.0
    %825 = vmatpush.msra.mxu0 0.0
    %826 = vmatpush.msra.mxu0 0.0
    %827 = vmatpush.msra.mxu0 0.0
    %828 = vmatpush.msra.mxu0 0.0
    %829 = vmatpush.msra.mxu0 0.0
    %830 = vmatpush.msra.mxu0 0.0
    %831 = vmatpush.msra.mxu0 0.0
    %832 = vmatpush.msra.mxu0 0.0
    %833 = vmatpush.msra.mxu0 0.0
    %834 = vmatpush.msra.mxu0 0.0
    %835 = vmatpush.msra.mxu0 0.0
    %836 = vmatpush.msra.mxu0 %v819
    %837 = vmatmul.f32.gmra.mxu0 %v765
    %v838 = vpop.f32.mrf.mxu0
    %v839 = vadd.f32 0.0, %v838
    %840 = vmatmul.f32.gmra.mxu0 %v768
    %v841 = vpop.f32.mrf.mxu0
    %v842 = vadd.f32 0.0, %v841
    %843 = vdwg.mxu0
    %v844 = vadd.f32 %v522, %v839
    %v845 = vadd.f32 %v525, %v842
    %846 = vmatpush.msra.mxu0 %v718
    %847 = vmatpush.msra.mxu0 %v717
    %848 = vmatpush.msra.mxu0 %v716
    %849 = vmatpush.msra.mxu0 %v715
    %850 = vmatpush.msra.mxu0 %v714
    %851 = vmatpush.msra.mxu0 %v713
    %852 = vmatpush.msra.mxu0 %v712
    %853 = vmatpush.msra.mxu0 %v711
    %854 = vmatpush.msra.mxu0 %v710
    %855 = vmatpush.msra.mxu0 %v709
    %856 = vmatpush.msra.mxu0 %v708
    %857 = vmatpush.msra.mxu0 %v707
    %858 = vmatpush.msra.mxu0 %v706
    %859 = vmatpush.msra.mxu0 %v705
    %860 = vmatpush.msra.mxu0 %v704
    %861 = vmatpush.msra.mxu0 %v703
    %862 = vmatmul.f32.gmra.mxu0 %v100
    %v863 = vpop.f32.mrf.mxu0
    %v864 = vadd.f32 0.0, %v863
    %865 = vdwg.mxu0
    %v867 = vsel %vm396, %v864, 0
    %869 = vmatpush.msra.mxu0 0.0
    %870 = vmatpush.msra.mxu0 0.0
    %871 = vmatpush.msra.mxu0 0.0
    %872 = vmatpush.msra.mxu0 0.0
    %873 = vmatpush.msra.mxu0 0.0
    %874 = vmatpush.msra.mxu0 0.0
    %875 = vmatpush.msra.mxu0 0.0
    %876 = vmatpush.msra.mxu0 0.0
    %877 = vmatpush.msra.mxu0 0.0
    %878 = vmatpush.msra.mxu0 0.0
    %879 = vmatpush.msra.mxu0 0.0
    %880 = vmatpush.msra.mxu0 0.0
    %881 = vmatpush.msra.mxu0 0.0
    %882 = vmatpush.msra.mxu0 0.0
    %883 = vmatpush.msra.mxu0 0.0
    %884 = vmatpush.msra.mxu0 %v867
    %885 = vmatmul.f32.gmra.mxu0 %v765
    %v886 = vpop.f32.mrf.mxu0
    %v887 = vadd.f32 0.0, %v886
    %888 = vmatmul.f32.gmra.mxu0 %v768
    %v889 = vpop.f32.mrf.mxu0
    %v890 = vadd.f32 0.0, %v889
    %891 = vdwg.mxu0
    %v892 = vadd.f32 %v594, %v887
    %v893 = vadd.f32 %v597, %v890
    %894 = vmatpush.msra.mxu0 %v718
    %895 = vmatpush.msra.mxu0 %v717
    %896 = vmatpush.msra.mxu0 %v716
    %897 = vmatpush.msra.mxu0 %v715
    %898 = vmatpush.msra.mxu0 %v714
    %899 = vmatpush.msra.mxu0 %v713
    %900 = vmatpush.msra.mxu0 %v712
    %901 = vmatpush.msra.mxu0 %v711
    %902 = vmatpush.msra.mxu0 %v710
    %903 = vmatpush.msra.mxu0 %v709
    %904 = vmatpush.msra.mxu0 %v708
    %905 = vmatpush.msra.mxu0 %v707
    %906 = vmatpush.msra.mxu0 %v706
    %907 = vmatpush.msra.mxu0 %v705
    %908 = vmatpush.msra.mxu0 %v704
    %909 = vmatpush.msra.mxu0 %v703
    %910 = vmatmul.f32.gmra.mxu0 %v102
    %v911 = vpop.f32.mrf.mxu0
    %v912 = vadd.f32 0.0, %v911
    %913 = vdwg.mxu0
    %v915 = vsel %vm396, %v912, 0
    %917 = vmatpush.msra.mxu0 0.0
    %918 = vmatpush.msra.mxu0 0.0
    %919 = vmatpush.msra.mxu0 0.0
    %920 = vmatpush.msra.mxu0 0.0
    %921 = vmatpush.msra.mxu0 0.0
    %922 = vmatpush.msra.mxu0 0.0
    %923 = vmatpush.msra.mxu0 0.0
    %924 = vmatpush.msra.mxu0 0.0
    %925 = vmatpush.msra.mxu0 0.0
    %926 = vmatpush.msra.mxu0 0.0
    %927 = vmatpush.msra.mxu0 0.0
    %928 = vmatpush.msra.mxu0 0.0
    %929 = vmatpush.msra.mxu0 0.0
    %930 = vmatpush.msra.mxu0 0.0
    %931 = vmatpush.msra.mxu0 0.0
    %932 = vmatpush.msra.mxu0 %v915
    %933 = vmatmul.f32.gmra.mxu0 %v765
    %v934 = vpop.f32.mrf.mxu0
    %v935 = vadd.f32 0.0, %v934
    %936 = vmatmul.f32.gmra.mxu0 %v768
    %v937 = vpop.f32.mrf.mxu0
    %v938 = vadd.f32 0.0, %v937
    %939 = vdwg.mxu0
    %v940 = vadd.f32 %v666, %v935
    %v941 = vadd.f32 %v669, %v938
    %vm942 = vcmp.eq.s32.totalorder %v122, 0
    %vm943 = vcmp.eq.s32.totalorder %v123, 0
    %vm944 = vcmp.eq.s32.totalorder %v124, 0
    %vm945 = vcmp.eq.s32.totalorder %v125, 0
    %vm946 = vcmp.eq.s32.totalorder %v126, 0
    %vm947 = vcmp.eq.s32.totalorder %v127, 0
    %vm948 = vcmp.eq.s32.totalorder %v128, 0
    %vm949 = vcmp.eq.s32.totalorder %v129, 0
    %vm950 = vcmp.eq.s32.totalorder %v130, 0
    %vm951 = vcmp.eq.s32.totalorder %v131, 0
    %vm952 = vcmp.eq.s32.totalorder %v132, 0
    %vm953 = vcmp.eq.s32.totalorder %v133, 0
    %vm954 = vcmp.eq.s32.totalorder %v134, 0
    %vm955 = vcmp.eq.s32.totalorder %v135, 0
    %vm956 = vcmp.eq.s32.totalorder %v136, 0
    %vm957 = vcmp.eq.s32.totalorder %v137, 0
    %v958 = vsel %vm942, 1, 0
    %v959 = vsel %vm943, 1, 0
    %v960 = vsel %vm944, 1, 0
    %v961 = vsel %vm945, 1, 0
    %v962 = vsel %vm946, 1, 0
    %v963 = vsel %vm947, 1, 0
    %v964 = vsel %vm948, 1, 0
    %v965 = vsel %vm949, 1, 0
    %v966 = vsel %vm950, 1, 0
    %v967 = vsel %vm951, 1, 0
    %v968 = vsel %vm952, 1, 0
    %v969 = vsel %vm953, 1, 0
    %v970 = vsel %vm954, 1, 0
    %v971 = vsel %vm955, 1, 0
    %v972 = vsel %vm956, 1, 0
    %v973 = vsel %vm957, 1, 0
    %v974 = vcvt.s32.f32 %v958
    %v975 = vcvt.s32.f32 %v959
    %v976 = vcvt.s32.f32 %v960
    %v977 = vcvt.s32.f32 %v961
    %v978 = vcvt.s32.f32 %v962
    %v979 = vcvt.s32.f32 %v963
    %v980 = vcvt.s32.f32 %v964
    %v981 = vcvt.s32.f32 %v965
    %v982 = vcvt.s32.f32 %v966
    %v983 = vcvt.s32.f32 %v967
    %v984 = vcvt.s32.f32 %v968
    %v985 = vcvt.s32.f32 %v969
    %v986 = vcvt.s32.f32 %v970
    %v987 = vcvt.s32.f32 %v971
    %v988 = vcvt.s32.f32 %v972
    %v989 = vcvt.s32.f32 %v973
    %s990 = scalar_lea.vmem %s2, 24
    %v991 = vld [vmem:[%s990] sm:$0xff]
    %992 = vmatpush.msra.mxu0 0.0
    %993 = vmatpush.msra.mxu0 0.0
    %994 = vmatpush.msra.mxu0 0.0
    %995 = vmatpush.msra.mxu0 0.0
    %996 = vmatpush.msra.mxu0 0.0
    %997 = vmatpush.msra.mxu0 0.0
    %998 = vmatpush.msra.mxu0 0.0
    %999 = vmatpush.msra.mxu0 0.0
    %1000 = vmatpush.msra.mxu0 0.0
    %1001 = vmatpush.msra.mxu0 0.0
    %1002 = vmatpush.msra.mxu0 0.0
    %1003 = vmatpush.msra.mxu0 0.0
    %1004 = vmatpush.msra.mxu0 0.0
    %1005 = vmatpush.msra.mxu0 0.0
    %1006 = vmatpush.msra.mxu0 0.0
    %1007 = vmatpush.msra.mxu0 %v991
    %1008 = vmatmul.f32.gmra.mxu0 %v188
    %v1009 = vpop.f32.mrf.mxu0
    %v1010 = vadd.f32 0.0, %v1009
    %1011 = vmatmul.f32.gmra.mxu0 %v191
    %v1012 = vpop.f32.mrf.mxu0
    %v1013 = vadd.f32 0.0, %v1012
    %1014 = vdwg.mxu0
    %1015 = vmatpush.msra.mxu0 %v989
    %1016 = vmatpush.msra.mxu0 %v988
    %1017 = vmatpush.msra.mxu0 %v987
    %1018 = vmatpush.msra.mxu0 %v986
    %1019 = vmatpush.msra.mxu0 %v985
    %1020 = vmatpush.msra.mxu0 %v984
    %1021 = vmatpush.msra.mxu0 %v983
    %1022 = vmatpush.msra.mxu0 %v982
    %1023 = vmatpush.msra.mxu0 %v981
    %1024 = vmatpush.msra.mxu0 %v980
    %1025 = vmatpush.msra.mxu0 %v979
    %1026 = vmatpush.msra.mxu0 %v978
    %1027 = vmatpush.msra.mxu0 %v977
    %1028 = vmatpush.msra.mxu0 %v976
    %1029 = vmatpush.msra.mxu0 %v975
    %1030 = vmatpush.msra.mxu0 %v974
    %1031 = vmatmul.f32.gmra.mxu0 %v96
    %v1032 = vpop.f32.mrf.mxu0
    %v1033 = vadd.f32 0.0, %v1032
    %1034 = vdwg.mxu0
    %v1036 = vsel %vm389, %v1010, 0
    %v1039 = vsel %vm389, %v1013, 0
    %v1042 = vsel %vm396, %v1033, 0
    %1044 = vmatpush.msra.mxu0 0.0
    %1045 = vmatpush.msra.mxu0 0.0
    %1046 = vmatpush.msra.mxu0 0.0
    %1047 = vmatpush.msra.mxu0 0.0
    %1048 = vmatpush.msra.mxu0 0.0
    %1049 = vmatpush.msra.mxu0 0.0
    %1050 = vmatpush.msra.mxu0 0.0
    %1051 = vmatpush.msra.mxu0 0.0
    %1052 = vmatpush.msra.mxu0 0.0
    %1053 = vmatpush.msra.mxu0 0.0
    %1054 = vmatpush.msra.mxu0 0.0
    %1055 = vmatpush.msra.mxu0 0.0
    %1056 = vmatpush.msra.mxu0 0.0
    %1057 = vmatpush.msra.mxu0 0.0
    %1058 = vmatpush.msra.mxu0 0.0
    %1059 = vmatpush.msra.mxu0 %v1042
    %1060 = vmatmul.f32.gmra.mxu0 %v1036
    %v1061 = vpop.f32.mrf.mxu0
    %v1062 = vadd.f32 0.0, %v1061
    %1063 = vmatmul.f32.gmra.mxu0 %v1039
    %v1064 = vpop.f32.mrf.mxu0
    %v1065 = vadd.f32 0.0, %v1064
    %1066 = vdwg.mxu0
    %v1067 = vadd.f32 %v796, %v1062
    %v1068 = vadd.f32 %v797, %v1065
    %1069 = vmatpush.msra.mxu0 %v989
    %1070 = vmatpush.msra.mxu0 %v988
    %1071 = vmatpush.msra.mxu0 %v987
    %1072 = vmatpush.msra.mxu0 %v986
    %1073 = vmatpush.msra.mxu0 %v985
    %1074 = vmatpush.msra.mxu0 %v984
    %1075 = vmatpush.msra.mxu0 %v983
    %1076 = vmatpush.msra.mxu0 %v982
    %1077 = vmatpush.msra.mxu0 %v981
    %1078 = vmatpush.msra.mxu0 %v980
    %1079 = vmatpush.msra.mxu0 %v979
    %1080 = vmatpush.msra.mxu0 %v978
    %1081 = vmatpush.msra.mxu0 %v977
    %1082 = vmatpush.msra.mxu0 %v976
    %1083 = vmatpush.msra.mxu0 %v975
    %1084 = vmatpush.msra.mxu0 %v974
    %1085 = vmatmul.f32.gmra.mxu0 %v98
    %v1086 = vpop.f32.mrf.mxu0
    %v1087 = vadd.f32 0.0, %v1086
    %1088 = vdwg.mxu0
    %v1090 = vsel %vm396, %v1087, 0
    %1092 = vmatpush.msra.mxu0 0.0
    %1093 = vmatpush.msra.mxu0 0.0
    %1094 = vmatpush.msra.mxu0 0.0
    %1095 = vmatpush.msra.mxu0 0.0
    %1096 = vmatpush.msra.mxu0 0.0
    %1097 = vmatpush.msra.mxu0 0.0
    %1098 = vmatpush.msra.mxu0 0.0
    %1099 = vmatpush.msra.mxu0 0.0
    %1100 = vmatpush.msra.mxu0 0.0
    %1101 = vmatpush.msra.mxu0 0.0
    %1102 = vmatpush.msra.mxu0 0.0
    %1103 = vmatpush.msra.mxu0 0.0
    %1104 = vmatpush.msra.mxu0 0.0
    %1105 = vmatpush.msra.mxu0 0.0
    %1106 = vmatpush.msra.mxu0 0.0
    %1107 = vmatpush.msra.mxu0 %v1090
    %1108 = vmatmul.f32.gmra.mxu0 %v1036
    %v1109 = vpop.f32.mrf.mxu0
    %v1110 = vadd.f32 0.0, %v1109
    %1111 = vmatmul.f32.gmra.mxu0 %v1039
    %v1112 = vpop.f32.mrf.mxu0
    %v1113 = vadd.f32 0.0, %v1112
    %1114 = vdwg.mxu0
    %v1115 = vadd.f32 %v844, %v1110
    %v1116 = vadd.f32 %v845, %v1113
    %1117 = vmatpush.msra.mxu0 %v989
    %1118 = vmatpush.msra.mxu0 %v988
    %1119 = vmatpush.msra.mxu0 %v987
    %1120 = vmatpush.msra.mxu0 %v986
    %1121 = vmatpush.msra.mxu0 %v985
    %1122 = vmatpush.msra.mxu0 %v984
    %1123 = vmatpush.msra.mxu0 %v983
    %1124 = vmatpush.msra.mxu0 %v982
    %1125 = vmatpush.msra.mxu0 %v981
    %1126 = vmatpush.msra.mxu0 %v980
    %1127 = vmatpush.msra.mxu0 %v979
    %1128 = vmatpush.msra.mxu0 %v978
    %1129 = vmatpush.msra.mxu0 %v977
    %1130 = vmatpush.msra.mxu0 %v976
    %1131 = vmatpush.msra.mxu0 %v975
    %1132 = vmatpush.msra.mxu0 %v974
    %1133 = vmatmul.f32.gmra.mxu0 %v100
    %v1134 = vpop.f32.mrf.mxu0
    %v1135 = vadd.f32 0.0, %v1134
    %1136 = vdwg.mxu0
    %v1138 = vsel %vm396, %v1135, 0
    %1140 = vmatpush.msra.mxu0 0.0
    %1141 = vmatpush.msra.mxu0 0.0
    %1142 = vmatpush.msra.mxu0 0.0
    %1143 = vmatpush.msra.mxu0 0.0
    %1144 = vmatpush.msra.mxu0 0.0
    %1145 = vmatpush.msra.mxu0 0.0
    %1146 = vmatpush.msra.mxu0 0.0
    %1147 = vmatpush.msra.mxu0 0.0
    %1148 = vmatpush.msra.mxu0 0.0
    %1149 = vmatpush.msra.mxu0 0.0
    %1150 = vmatpush.msra.mxu0 0.0
    %1151 = vmatpush.msra.mxu0 0.0
    %1152 = vmatpush.msra.mxu0 0.0
    %1153 = vmatpush.msra.mxu0 0.0
    %1154 = vmatpush.msra.mxu0 0.0
    %1155 = vmatpush.msra.mxu0 %v1138
    %1156 = vmatmul.f32.gmra.mxu0 %v1036
    %v1157 = vpop.f32.mrf.mxu0
    %v1158 = vadd.f32 0.0, %v1157
    %1159 = vmatmul.f32.gmra.mxu0 %v1039
    %v1160 = vpop.f32.mrf.mxu0
    %v1161 = vadd.f32 0.0, %v1160
    %1162 = vdwg.mxu0
    %v1163 = vadd.f32 %v892, %v1158
    %v1164 = vadd.f32 %v893, %v1161
    %1165 = vmatpush.msra.mxu0 %v989
    %1166 = vmatpush.msra.mxu0 %v988
    %1167 = vmatpush.msra.mxu0 %v987
    %1168 = vmatpush.msra.mxu0 %v986
    %1169 = vmatpush.msra.mxu0 %v985
    %1170 = vmatpush.msra.mxu0 %v984
    %1171 = vmatpush.msra.mxu0 %v983
    %1172 = vmatpush.msra.mxu0 %v982
    %1173 = vmatpush.msra.mxu0 %v981
    %1174 = vmatpush.msra.mxu0 %v980
    %1175 = vmatpush.msra.mxu0 %v979
    %1176 = vmatpush.msra.mxu0 %v978
    %1177 = vmatpush.msra.mxu0 %v977
    %1178 = vmatpush.msra.mxu0 %v976
    %1179 = vmatpush.msra.mxu0 %v975
    %1180 = vmatpush.msra.mxu0 %v974
    %1181 = vmatmul.f32.gmra.mxu0 %v102
    %v1182 = vpop.f32.mrf.mxu0
    %v1183 = vadd.f32 0.0, %v1182
    %1184 = vdwg.mxu0
    %v1186 = vsel %vm396, %v1183, 0
    %1188 = vmatpush.msra.mxu0 0.0
    %1189 = vmatpush.msra.mxu0 0.0
    %1190 = vmatpush.msra.mxu0 0.0
    %1191 = vmatpush.msra.mxu0 0.0
    %1192 = vmatpush.msra.mxu0 0.0
    %1193 = vmatpush.msra.mxu0 0.0
    %1194 = vmatpush.msra.mxu0 0.0
    %1195 = vmatpush.msra.mxu0 0.0
    %1196 = vmatpush.msra.mxu0 0.0
    %1197 = vmatpush.msra.mxu0 0.0
    %1198 = vmatpush.msra.mxu0 0.0
    %1199 = vmatpush.msra.mxu0 0.0
    %1200 = vmatpush.msra.mxu0 0.0
    %1201 = vmatpush.msra.mxu0 0.0
    %1202 = vmatpush.msra.mxu0 0.0
    %1203 = vmatpush.msra.mxu0 %v1186
    %1204 = vmatmul.f32.gmra.mxu0 %v1036
    %v1205 = vpop.f32.mrf.mxu0
    %v1206 = vadd.f32 0.0, %v1205
    %1207 = vmatmul.f32.gmra.mxu0 %v1039
    %v1208 = vpop.f32.mrf.mxu0
    %v1209 = vadd.f32 0.0, %v1208
    %1210 = vdwg.mxu0
    %v1211 = vadd.f32 %v940, %v1206
    %v1212 = vadd.f32 %v941, %v1209
    %vm1213 = vcmp.eq.s32.totalorder %v122, 1
    %vm1214 = vcmp.eq.s32.totalorder %v123, 1
    %vm1215 = vcmp.eq.s32.totalorder %v124, 1
    %vm1216 = vcmp.eq.s32.totalorder %v125, 1
    %vm1217 = vcmp.eq.s32.totalorder %v126, 1
    %vm1218 = vcmp.eq.s32.totalorder %v127, 1
    %vm1219 = vcmp.eq.s32.totalorder %v128, 1
    %vm1220 = vcmp.eq.s32.totalorder %v129, 1
    %vm1221 = vcmp.eq.s32.totalorder %v130, 1
    %vm1222 = vcmp.eq.s32.totalorder %v131, 1
    %vm1223 = vcmp.eq.s32.totalorder %v132, 1
    %vm1224 = vcmp.eq.s32.totalorder %v133, 1
    %vm1225 = vcmp.eq.s32.totalorder %v134, 1
    %vm1226 = vcmp.eq.s32.totalorder %v135, 1
    %vm1227 = vcmp.eq.s32.totalorder %v136, 1
    %vm1228 = vcmp.eq.s32.totalorder %v137, 1
    %v1229 = vsel %vm1213, 1, 0
    %v1230 = vsel %vm1214, 1, 0
    %v1231 = vsel %vm1215, 1, 0
    %v1232 = vsel %vm1216, 1, 0
    %v1233 = vsel %vm1217, 1, 0
    %v1234 = vsel %vm1218, 1, 0
    %v1235 = vsel %vm1219, 1, 0
    %v1236 = vsel %vm1220, 1, 0
    %v1237 = vsel %vm1221, 1, 0
    %v1238 = vsel %vm1222, 1, 0
    %v1239 = vsel %vm1223, 1, 0
    %v1240 = vsel %vm1224, 1, 0
    %v1241 = vsel %vm1225, 1, 0
    %v1242 = vsel %vm1226, 1, 0
    %v1243 = vsel %vm1227, 1, 0
    %v1244 = vsel %vm1228, 1, 0
    %v1245 = vcvt.s32.f32 %v1229
    %v1246 = vcvt.s32.f32 %v1230
    %v1247 = vcvt.s32.f32 %v1231
    %v1248 = vcvt.s32.f32 %v1232
    %v1249 = vcvt.s32.f32 %v1233
    %v1250 = vcvt.s32.f32 %v1234
    %v1251 = vcvt.s32.f32 %v1235
    %v1252 = vcvt.s32.f32 %v1236
    %v1253 = vcvt.s32.f32 %v1237
    %v1254 = vcvt.s32.f32 %v1238
    %v1255 = vcvt.s32.f32 %v1239
    %v1256 = vcvt.s32.f32 %v1240
    %v1257 = vcvt.s32.f32 %v1241
    %v1258 = vcvt.s32.f32 %v1242
    %v1259 = vcvt.s32.f32 %v1243
    %v1260 = vcvt.s32.f32 %v1244
    %s1261 = scalar_lea.vmem %s2, 32
    %v1262 = vld [vmem:[%s1261] sm:$0xff]
    %1263 = vmatpush.msra.mxu0 0.0
    %1264 = vmatpush.msra.mxu0 0.0
    %1265 = vmatpush.msra.mxu0 0.0
    %1266 = vmatpush.msra.mxu0 0.0
    %1267 = vmatpush.msra.mxu0 0.0
    %1268 = vmatpush.msra.mxu0 0.0
    %1269 = vmatpush.msra.mxu0 0.0
    %1270 = vmatpush.msra.mxu0 0.0
    %1271 = vmatpush.msra.mxu0 0.0
    %1272 = vmatpush.msra.mxu0 0.0
    %1273 = vmatpush.msra.mxu0 0.0
    %1274 = vmatpush.msra.mxu0 0.0
    %1275 = vmatpush.msra.mxu0 0.0
    %1276 = vmatpush.msra.mxu0 0.0
    %1277 = vmatpush.msra.mxu0 0.0
    %1278 = vmatpush.msra.mxu0 %v1262
    %1279 = vmatmul.f32.gmra.mxu0 %v188
    %v1280 = vpop.f32.mrf.mxu0
    %v1281 = vadd.f32 0.0, %v1280
    %1282 = vmatmul.f32.gmra.mxu0 %v191
    %v1283 = vpop.f32.mrf.mxu0
    %v1284 = vadd.f32 0.0, %v1283
    %1285 = vdwg.mxu0
    %1286 = vmatpush.msra.mxu0 %v1260
    %1287 = vmatpush.msra.mxu0 %v1259
    %1288 = vmatpush.msra.mxu0 %v1258
    %1289 = vmatpush.msra.mxu0 %v1257
    %1290 = vmatpush.msra.mxu0 %v1256
    %1291 = vmatpush.msra.mxu0 %v1255
    %1292 = vmatpush.msra.mxu0 %v1254
    %1293 = vmatpush.msra.mxu0 %v1253
    %1294 = vmatpush.msra.mxu0 %v1252
    %1295 = vmatpush.msra.mxu0 %v1251
    %1296 = vmatpush.msra.mxu0 %v1250
    %1297 = vmatpush.msra.mxu0 %v1249
    %1298 = vmatpush.msra.mxu0 %v1248
    %1299 = vmatpush.msra.mxu0 %v1247
    %1300 = vmatpush.msra.mxu0 %v1246
    %1301 = vmatpush.msra.mxu0 %v1245
    %1302 = vmatmul.f32.gmra.mxu0 %v96
    %v1303 = vpop.f32.mrf.mxu0
    %v1304 = vadd.f32 0.0, %v1303
    %1305 = vdwg.mxu0
    %v1307 = vsel %vm389, %v1281, 0
    %v1310 = vsel %vm389, %v1284, 0
    %v1313 = vsel %vm396, %v1304, 0
    %1315 = vmatpush.msra.mxu0 0.0
    %1316 = vmatpush.msra.mxu0 0.0
    %1317 = vmatpush.msra.mxu0 0.0
    %1318 = vmatpush.msra.mxu0 0.0
    %1319 = vmatpush.msra.mxu0 0.0
    %1320 = vmatpush.msra.mxu0 0.0
    %1321 = vmatpush.msra.mxu0 0.0
    %1322 = vmatpush.msra.mxu0 0.0
    %1323 = vmatpush.msra.mxu0 0.0
    %1324 = vmatpush.msra.mxu0 0.0
    %1325 = vmatpush.msra.mxu0 0.0
    %1326 = vmatpush.msra.mxu0 0.0
    %1327 = vmatpush.msra.mxu0 0.0
    %1328 = vmatpush.msra.mxu0 0.0
    %1329 = vmatpush.msra.mxu0 0.0
    %1330 = vmatpush.msra.mxu0 %v1313
    %1331 = vmatmul.f32.gmra.mxu0 %v1307
    %v1332 = vpop.f32.mrf.mxu0
    %v1333 = vadd.f32 0.0, %v1332
    %1334 = vmatmul.f32.gmra.mxu0 %v1310
    %v1335 = vpop.f32.mrf.mxu0
    %v1336 = vadd.f32 0.0, %v1335
    %1337 = vdwg.mxu0
    %v1338 = vadd.f32 %v1067, %v1333
    %v1339 = vadd.f32 %v1068, %v1336
    %1340 = vmatpush.msra.mxu0 %v1260
    %1341 = vmatpush.msra.mxu0 %v1259
    %1342 = vmatpush.msra.mxu0 %v1258
    %1343 = vmatpush.msra.mxu0 %v1257
    %1344 = vmatpush.msra.mxu0 %v1256
    %1345 = vmatpush.msra.mxu0 %v1255
    %1346 = vmatpush.msra.mxu0 %v1254
    %1347 = vmatpush.msra.mxu0 %v1253
    %1348 = vmatpush.msra.mxu0 %v1252
    %1349 = vmatpush.msra.mxu0 %v1251
    %1350 = vmatpush.msra.mxu0 %v1250
    %1351 = vmatpush.msra.mxu0 %v1249
    %1352 = vmatpush.msra.mxu0 %v1248
    %1353 = vmatpush.msra.mxu0 %v1247
    %1354 = vmatpush.msra.mxu0 %v1246
    %1355 = vmatpush.msra.mxu0 %v1245
    %1356 = vmatmul.f32.gmra.mxu0 %v98
    %v1357 = vpop.f32.mrf.mxu0
    %v1358 = vadd.f32 0.0, %v1357
    %1359 = vdwg.mxu0
    %v1361 = vsel %vm396, %v1358, 0
    %1363 = vmatpush.msra.mxu0 0.0
    %1364 = vmatpush.msra.mxu0 0.0
    %1365 = vmatpush.msra.mxu0 0.0
    %1366 = vmatpush.msra.mxu0 0.0
    %1367 = vmatpush.msra.mxu0 0.0
    %1368 = vmatpush.msra.mxu0 0.0
    %1369 = vmatpush.msra.mxu0 0.0
    %1370 = vmatpush.msra.mxu0 0.0
    %1371 = vmatpush.msra.mxu0 0.0
    %1372 = vmatpush.msra.mxu0 0.0
    %1373 = vmatpush.msra.mxu0 0.0
    %1374 = vmatpush.msra.mxu0 0.0
    %1375 = vmatpush.msra.mxu0 0.0
    %1376 = vmatpush.msra.mxu0 0.0
    %1377 = vmatpush.msra.mxu0 0.0
    %1378 = vmatpush.msra.mxu0 %v1361
    %1379 = vmatmul.f32.gmra.mxu0 %v1307
    %v1380 = vpop.f32.mrf.mxu0
    %v1381 = vadd.f32 0.0, %v1380
    %1382 = vmatmul.f32.gmra.mxu0 %v1310
    %v1383 = vpop.f32.mrf.mxu0
    %v1384 = vadd.f32 0.0, %v1383
    %1385 = vdwg.mxu0
    %v1386 = vadd.f32 %v1115, %v1381
    %v1387 = vadd.f32 %v1116, %v1384
    %1388 = vmatpush.msra.mxu0 %v1260
    %1389 = vmatpush.msra.mxu0 %v1259
    %1390 = vmatpush.msra.mxu0 %v1258
    %1391 = vmatpush.msra.mxu0 %v1257
    %1392 = vmatpush.msra.mxu0 %v1256
    %1393 = vmatpush.msra.mxu0 %v1255
    %1394 = vmatpush.msra.mxu0 %v1254
    %1395 = vmatpush.msra.mxu0 %v1253
    %1396 = vmatpush.msra.mxu0 %v1252
    %1397 = vmatpush.msra.mxu0 %v1251
    %1398 = vmatpush.msra.mxu0 %v1250
    %1399 = vmatpush.msra.mxu0 %v1249
    %1400 = vmatpush.msra.mxu0 %v1248
    %1401 = vmatpush.msra.mxu0 %v1247
    %1402 = vmatpush.msra.mxu0 %v1246
    %1403 = vmatpush.msra.mxu0 %v1245
    %1404 = vmatmul.f32.gmra.mxu0 %v100
    %v1405 = vpop.f32.mrf.mxu0
    %v1406 = vadd.f32 0.0, %v1405
    %1407 = vdwg.mxu0
    %v1409 = vsel %vm396, %v1406, 0
    %1411 = vmatpush.msra.mxu0 0.0
    %1412 = vmatpush.msra.mxu0 0.0
    %1413 = vmatpush.msra.mxu0 0.0
    %1414 = vmatpush.msra.mxu0 0.0
    %1415 = vmatpush.msra.mxu0 0.0
    %1416 = vmatpush.msra.mxu0 0.0
    %1417 = vmatpush.msra.mxu0 0.0
    %1418 = vmatpush.msra.mxu0 0.0
    %1419 = vmatpush.msra.mxu0 0.0
    %1420 = vmatpush.msra.mxu0 0.0
    %1421 = vmatpush.msra.mxu0 0.0
    %1422 = vmatpush.msra.mxu0 0.0
    %1423 = vmatpush.msra.mxu0 0.0
    %1424 = vmatpush.msra.mxu0 0.0
    %1425 = vmatpush.msra.mxu0 0.0
    %1426 = vmatpush.msra.mxu0 %v1409
    %1427 = vmatmul.f32.gmra.mxu0 %v1307
    %v1428 = vpop.f32.mrf.mxu0
    %v1429 = vadd.f32 0.0, %v1428
    %1430 = vmatmul.f32.gmra.mxu0 %v1310
    %v1431 = vpop.f32.mrf.mxu0
    %v1432 = vadd.f32 0.0, %v1431
    %1433 = vdwg.mxu0
    %v1434 = vadd.f32 %v1163, %v1429
    %v1435 = vadd.f32 %v1164, %v1432
    %1436 = vmatpush.msra.mxu0 %v1260
    %1437 = vmatpush.msra.mxu0 %v1259
    %1438 = vmatpush.msra.mxu0 %v1258
    %1439 = vmatpush.msra.mxu0 %v1257
    %1440 = vmatpush.msra.mxu0 %v1256
    %1441 = vmatpush.msra.mxu0 %v1255
    %1442 = vmatpush.msra.mxu0 %v1254
    %1443 = vmatpush.msra.mxu0 %v1253
    %1444 = vmatpush.msra.mxu0 %v1252
    %1445 = vmatpush.msra.mxu0 %v1251
    %1446 = vmatpush.msra.mxu0 %v1250
    %1447 = vmatpush.msra.mxu0 %v1249
    %1448 = vmatpush.msra.mxu0 %v1248
    %1449 = vmatpush.msra.mxu0 %v1247
    %1450 = vmatpush.msra.mxu0 %v1246
    %1451 = vmatpush.msra.mxu0 %v1245
    %1452 = vmatmul.f32.gmra.mxu0 %v102
    %v1453 = vpop.f32.mrf.mxu0
    %v1454 = vadd.f32 0.0, %v1453
    %1455 = vdwg.mxu0
    %v1457 = vsel %vm396, %v1454, 0
    %1459 = vmatpush.msra.mxu0 0.0
    %1460 = vmatpush.msra.mxu0 0.0
    %1461 = vmatpush.msra.mxu0 0.0
    %1462 = vmatpush.msra.mxu0 0.0
    %1463 = vmatpush.msra.mxu0 0.0
    %1464 = vmatpush.msra.mxu0 0.0
    %1465 = vmatpush.msra.mxu0 0.0
    %1466 = vmatpush.msra.mxu0 0.0
    %1467 = vmatpush.msra.mxu0 0.0
    %1468 = vmatpush.msra.mxu0 0.0
    %1469 = vmatpush.msra.mxu0 0.0
    %1470 = vmatpush.msra.mxu0 0.0
    %1471 = vmatpush.msra.mxu0 0.0
    %1472 = vmatpush.msra.mxu0 0.0
    %1473 = vmatpush.msra.mxu0 0.0
    %1474 = vmatpush.msra.mxu0 %v1457
    %1475 = vmatmul.f32.gmra.mxu0 %v1307
    %v1476 = vpop.f32.mrf.mxu0
    %v1477 = vadd.f32 0.0, %v1476
    %1478 = vmatmul.f32.gmra.mxu0 %v1310
    %v1479 = vpop.f32.mrf.mxu0
    %v1480 = vadd.f32 0.0, %v1479
    %1481 = vdwg.mxu0
    %v1482 = vadd.f32 %v1211, %v1477
    %v1483 = vadd.f32 %v1212, %v1480
    %vm1484 = vcmp.eq.s32.totalorder %v122, 2
    %vm1485 = vcmp.eq.s32.totalorder %v123, 2
    %vm1486 = vcmp.eq.s32.totalorder %v124, 2
    %vm1487 = vcmp.eq.s32.totalorder %v125, 2
    %vm1488 = vcmp.eq.s32.totalorder %v126, 2
    %vm1489 = vcmp.eq.s32.totalorder %v127, 2
    %vm1490 = vcmp.eq.s32.totalorder %v128, 2
    %vm1491 = vcmp.eq.s32.totalorder %v129, 2
    %vm1492 = vcmp.eq.s32.totalorder %v130, 2
    %vm1493 = vcmp.eq.s32.totalorder %v131, 2
    %vm1494 = vcmp.eq.s32.totalorder %v132, 2
    %vm1495 = vcmp.eq.s32.totalorder %v133, 2
    %vm1496 = vcmp.eq.s32.totalorder %v134, 2
    %vm1497 = vcmp.eq.s32.totalorder %v135, 2
    %vm1498 = vcmp.eq.s32.totalorder %v136, 2
    %vm1499 = vcmp.eq.s32.totalorder %v137, 2
    %v1500 = vsel %vm1484, 1, 0
    %v1501 = vsel %vm1485, 1, 0
    %v1502 = vsel %vm1486, 1, 0
    %v1503 = vsel %vm1487, 1, 0
    %v1504 = vsel %vm1488, 1, 0
    %v1505 = vsel %vm1489, 1, 0
    %v1506 = vsel %vm1490, 1, 0
    %v1507 = vsel %vm1491, 1, 0
    %v1508 = vsel %vm1492, 1, 0
    %v1509 = vsel %vm1493, 1, 0
    %v1510 = vsel %vm1494, 1, 0
    %v1511 = vsel %vm1495, 1, 0
    %v1512 = vsel %vm1496, 1, 0
    %v1513 = vsel %vm1497, 1, 0
    %v1514 = vsel %vm1498, 1, 0
    %v1515 = vsel %vm1499, 1, 0
    %v1516 = vcvt.s32.f32 %v1500
    %v1517 = vcvt.s32.f32 %v1501
    %v1518 = vcvt.s32.f32 %v1502
    %v1519 = vcvt.s32.f32 %v1503
    %v1520 = vcvt.s32.f32 %v1504
    %v1521 = vcvt.s32.f32 %v1505
    %v1522 = vcvt.s32.f32 %v1506
    %v1523 = vcvt.s32.f32 %v1507
    %v1524 = vcvt.s32.f32 %v1508
    %v1525 = vcvt.s32.f32 %v1509
    %v1526 = vcvt.s32.f32 %v1510
    %v1527 = vcvt.s32.f32 %v1511
    %v1528 = vcvt.s32.f32 %v1512
    %v1529 = vcvt.s32.f32 %v1513
    %v1530 = vcvt.s32.f32 %v1514
    %v1531 = vcvt.s32.f32 %v1515
    %s1532 = scalar_lea.vmem %s2, 40
    %v1533 = vld [vmem:[%s1532] sm:$0xff]
    %1534 = vmatpush.msra.mxu0 0.0
    %1535 = vmatpush.msra.mxu0 0.0
    %1536 = vmatpush.msra.mxu0 0.0
    %1537 = vmatpush.msra.mxu0 0.0
    %1538 = vmatpush.msra.mxu0 0.0
    %1539 = vmatpush.msra.mxu0 0.0
    %1540 = vmatpush.msra.mxu0 0.0
    %1541 = vmatpush.msra.mxu0 0.0
    %1542 = vmatpush.msra.mxu0 0.0
    %1543 = vmatpush.msra.mxu0 0.0
    %1544 = vmatpush.msra.mxu0 0.0
    %1545 = vmatpush.msra.mxu0 0.0
    %1546 = vmatpush.msra.mxu0 0.0
    %1547 = vmatpush.msra.mxu0 0.0
    %1548 = vmatpush.msra.mxu0 0.0
    %1549 = vmatpush.msra.mxu0 %v1533
    %1550 = vmatmul.f32.gmra.mxu0 %v188
    %v1551 = vpop.f32.mrf.mxu0
    %v1552 = vadd.f32 0.0, %v1551
    %1553 = vmatmul.f32.gmra.mxu0 %v191
    %v1554 = vpop.f32.mrf.mxu0
    %v1555 = vadd.f32 0.0, %v1554
    %1556 = vdwg.mxu0
    %1557 = vmatpush.msra.mxu0 %v1531
    %1558 = vmatpush.msra.mxu0 %v1530
    %1559 = vmatpush.msra.mxu0 %v1529
    %1560 = vmatpush.msra.mxu0 %v1528
    %1561 = vmatpush.msra.mxu0 %v1527
    %1562 = vmatpush.msra.mxu0 %v1526
    %1563 = vmatpush.msra.mxu0 %v1525
    %1564 = vmatpush.msra.mxu0 %v1524
    %1565 = vmatpush.msra.mxu0 %v1523
    %1566 = vmatpush.msra.mxu0 %v1522
    %1567 = vmatpush.msra.mxu0 %v1521
    %1568 = vmatpush.msra.mxu0 %v1520
    %1569 = vmatpush.msra.mxu0 %v1519
    %1570 = vmatpush.msra.mxu0 %v1518
    %1571 = vmatpush.msra.mxu0 %v1517
    %1572 = vmatpush.msra.mxu0 %v1516
    %1573 = vmatmul.f32.gmra.mxu0 %v96
    %v1574 = vpop.f32.mrf.mxu0
    %v1575 = vadd.f32 0.0, %v1574
    %1576 = vdwg.mxu0
    %v1578 = vsel %vm389, %v1552, 0
    %v1581 = vsel %vm389, %v1555, 0
    %v1584 = vsel %vm396, %v1575, 0
    %1586 = vmatpush.msra.mxu0 0.0
    %1587 = vmatpush.msra.mxu0 0.0
    %1588 = vmatpush.msra.mxu0 0.0
    %1589 = vmatpush.msra.mxu0 0.0
    %1590 = vmatpush.msra.mxu0 0.0
    %1591 = vmatpush.msra.mxu0 0.0
    %1592 = vmatpush.msra.mxu0 0.0
    %1593 = vmatpush.msra.mxu0 0.0
    %1594 = vmatpush.msra.mxu0 0.0
    %1595 = vmatpush.msra.mxu0 0.0
    %1596 = vmatpush.msra.mxu0 0.0
    %1597 = vmatpush.msra.mxu0 0.0
    %1598 = vmatpush.msra.mxu0 0.0
    %1599 = vmatpush.msra.mxu0 0.0
    %1600 = vmatpush.msra.mxu0 0.0
    %1601 = vmatpush.msra.mxu0 %v1584
    %1602 = vmatmul.f32.gmra.mxu0 %v1578
    %v1603 = vpop.f32.mrf.mxu0
    %v1604 = vadd.f32 0.0, %v1603
    %1605 = vmatmul.f32.gmra.mxu0 %v1581
    %v1606 = vpop.f32.mrf.mxu0
    %v1607 = vadd.f32 0.0, %v1606
    %1608 = vdwg.mxu0
    %v1609 = vadd.f32 %v1338, %v1604
    %v1610 = vadd.f32 %v1339, %v1607
    %1611 = vmatpush.msra.mxu0 %v1531
    %1612 = vmatpush.msra.mxu0 %v1530
    %1613 = vmatpush.msra.mxu0 %v1529
    %1614 = vmatpush.msra.mxu0 %v1528
    %1615 = vmatpush.msra.mxu0 %v1527
    %1616 = vmatpush.msra.mxu0 %v1526
    %1617 = vmatpush.msra.mxu0 %v1525
    %1618 = vmatpush.msra.mxu0 %v1524
    %1619 = vmatpush.msra.mxu0 %v1523
    %1620 = vmatpush.msra.mxu0 %v1522
    %1621 = vmatpush.msra.mxu0 %v1521
    %1622 = vmatpush.msra.mxu0 %v1520
    %1623 = vmatpush.msra.mxu0 %v1519
    %1624 = vmatpush.msra.mxu0 %v1518
    %1625 = vmatpush.msra.mxu0 %v1517
    %1626 = vmatpush.msra.mxu0 %v1516
    %1627 = vmatmul.f32.gmra.mxu0 %v98
    %v1628 = vpop.f32.mrf.mxu0
    %v1629 = vadd.f32 0.0, %v1628
    %1630 = vdwg.mxu0
    %v1632 = vsel %vm396, %v1629, 0
    %1634 = vmatpush.msra.mxu0 0.0
    %1635 = vmatpush.msra.mxu0 0.0
    %1636 = vmatpush.msra.mxu0 0.0
    %1637 = vmatpush.msra.mxu0 0.0
    %1638 = vmatpush.msra.mxu0 0.0
    %1639 = vmatpush.msra.mxu0 0.0
    %1640 = vmatpush.msra.mxu0 0.0
    %1641 = vmatpush.msra.mxu0 0.0
    %1642 = vmatpush.msra.mxu0 0.0
    %1643 = vmatpush.msra.mxu0 0.0
    %1644 = vmatpush.msra.mxu0 0.0
    %1645 = vmatpush.msra.mxu0 0.0
    %1646 = vmatpush.msra.mxu0 0.0
    %1647 = vmatpush.msra.mxu0 0.0
    %1648 = vmatpush.msra.mxu0 0.0
    %1649 = vmatpush.msra.mxu0 %v1632
    %1650 = vmatmul.f32.gmra.mxu0 %v1578
    %v1651 = vpop.f32.mrf.mxu0
    %v1652 = vadd.f32 0.0, %v1651
    %1653 = vmatmul.f32.gmra.mxu0 %v1581
    %v1654 = vpop.f32.mrf.mxu0
    %v1655 = vadd.f32 0.0, %v1654
    %1656 = vdwg.mxu0
    %v1657 = vadd.f32 %v1386, %v1652
    %v1658 = vadd.f32 %v1387, %v1655
    %1659 = vmatpush.msra.mxu0 %v1531
    %1660 = vmatpush.msra.mxu0 %v1530
    %1661 = vmatpush.msra.mxu0 %v1529
    %1662 = vmatpush.msra.mxu0 %v1528
    %1663 = vmatpush.msra.mxu0 %v1527
    %1664 = vmatpush.msra.mxu0 %v1526
    %1665 = vmatpush.msra.mxu0 %v1525
    %1666 = vmatpush.msra.mxu0 %v1524
    %1667 = vmatpush.msra.mxu0 %v1523
    %1668 = vmatpush.msra.mxu0 %v1522
    %1669 = vmatpush.msra.mxu0 %v1521
    %1670 = vmatpush.msra.mxu0 %v1520
    %1671 = vmatpush.msra.mxu0 %v1519
    %1672 = vmatpush.msra.mxu0 %v1518
    %1673 = vmatpush.msra.mxu0 %v1517
    %1674 = vmatpush.msra.mxu0 %v1516
    %1675 = vmatmul.f32.gmra.mxu0 %v100
    %v1676 = vpop.f32.mrf.mxu0
    %v1677 = vadd.f32 0.0, %v1676
    %1678 = vdwg.mxu0
    %v1680 = vsel %vm396, %v1677, 0
    %1682 = vmatpush.msra.mxu0 0.0
    %1683 = vmatpush.msra.mxu0 0.0
    %1684 = vmatpush.msra.mxu0 0.0
    %1685 = vmatpush.msra.mxu0 0.0
    %1686 = vmatpush.msra.mxu0 0.0
    %1687 = vmatpush.msra.mxu0 0.0
    %1688 = vmatpush.msra.mxu0 0.0
    %1689 = vmatpush.msra.mxu0 0.0
    %1690 = vmatpush.msra.mxu0 0.0
    %1691 = vmatpush.msra.mxu0 0.0
    %1692 = vmatpush.msra.mxu0 0.0
    %1693 = vmatpush.msra.mxu0 0.0
    %1694 = vmatpush.msra.mxu0 0.0
    %1695 = vmatpush.msra.mxu0 0.0
    %1696 = vmatpush.msra.mxu0 0.0
    %1697 = vmatpush.msra.mxu0 %v1680
    %1698 = vmatmul.f32.gmra.mxu0 %v1578
    %v1699 = vpop.f32.mrf.mxu0
    %v1700 = vadd.f32 0.0, %v1699
    %1701 = vmatmul.f32.gmra.mxu0 %v1581
    %v1702 = vpop.f32.mrf.mxu0
    %v1703 = vadd.f32 0.0, %v1702
    %1704 = vdwg.mxu0
    %v1705 = vadd.f32 %v1434, %v1700
    %v1706 = vadd.f32 %v1435, %v1703
    %1707 = vmatpush.msra.mxu0 %v1531
    %1708 = vmatpush.msra.mxu0 %v1530
    %1709 = vmatpush.msra.mxu0 %v1529
    %1710 = vmatpush.msra.mxu0 %v1528
    %1711 = vmatpush.msra.mxu0 %v1527
    %1712 = vmatpush.msra.mxu0 %v1526
    %1713 = vmatpush.msra.mxu0 %v1525
    %1714 = vmatpush.msra.mxu0 %v1524
    %1715 = vmatpush.msra.mxu0 %v1523
    %1716 = vmatpush.msra.mxu0 %v1522
    %1717 = vmatpush.msra.mxu0 %v1521
    %1718 = vmatpush.msra.mxu0 %v1520
    %1719 = vmatpush.msra.mxu0 %v1519
    %1720 = vmatpush.msra.mxu0 %v1518
    %1721 = vmatpush.msra.mxu0 %v1517
    %1722 = vmatpush.msra.mxu0 %v1516
    %1723 = vmatmul.f32.gmra.mxu0 %v102
    %v1724 = vpop.f32.mrf.mxu0
    %v1725 = vadd.f32 0.0, %v1724
    %1726 = vdwg.mxu0
    %v1728 = vsel %vm396, %v1725, 0
    %1730 = vmatpush.msra.mxu0 0.0
    %1731 = vmatpush.msra.mxu0 0.0
    %1732 = vmatpush.msra.mxu0 0.0
    %1733 = vmatpush.msra.mxu0 0.0
    %1734 = vmatpush.msra.mxu0 0.0
    %1735 = vmatpush.msra.mxu0 0.0
    %1736 = vmatpush.msra.mxu0 0.0
    %1737 = vmatpush.msra.mxu0 0.0
    %1738 = vmatpush.msra.mxu0 0.0
    %1739 = vmatpush.msra.mxu0 0.0
    %1740 = vmatpush.msra.mxu0 0.0
    %1741 = vmatpush.msra.mxu0 0.0
    %1742 = vmatpush.msra.mxu0 0.0
    %1743 = vmatpush.msra.mxu0 0.0
    %1744 = vmatpush.msra.mxu0 0.0
    %1745 = vmatpush.msra.mxu0 %v1728
    %1746 = vmatmul.f32.gmra.mxu0 %v1578
    %v1747 = vpop.f32.mrf.mxu0
    %v1748 = vadd.f32 0.0, %v1747
    %1749 = vmatmul.f32.gmra.mxu0 %v1581
    %v1750 = vpop.f32.mrf.mxu0
    %v1751 = vadd.f32 0.0, %v1750
    %1752 = vdwg.mxu0
    %v1753 = vadd.f32 %v1482, %v1748
    %v1754 = vadd.f32 %v1483, %v1751
    %vm1755 = vcmp.eq.s32.totalorder %v122, 3
    %vm1756 = vcmp.eq.s32.totalorder %v123, 3
    %vm1757 = vcmp.eq.s32.totalorder %v124, 3
    %vm1758 = vcmp.eq.s32.totalorder %v125, 3
    %vm1759 = vcmp.eq.s32.totalorder %v126, 3
    %vm1760 = vcmp.eq.s32.totalorder %v127, 3
    %vm1761 = vcmp.eq.s32.totalorder %v128, 3
    %vm1762 = vcmp.eq.s32.totalorder %v129, 3
    %vm1763 = vcmp.eq.s32.totalorder %v130, 3
    %vm1764 = vcmp.eq.s32.totalorder %v131, 3
    %vm1765 = vcmp.eq.s32.totalorder %v132, 3
    %vm1766 = vcmp.eq.s32.totalorder %v133, 3
    %vm1767 = vcmp.eq.s32.totalorder %v134, 3
    %vm1768 = vcmp.eq.s32.totalorder %v135, 3
    %vm1769 = vcmp.eq.s32.totalorder %v136, 3
    %vm1770 = vcmp.eq.s32.totalorder %v137, 3
    %v1771 = vsel %vm1755, 1, 0
    %v1772 = vsel %vm1756, 1, 0
    %v1773 = vsel %vm1757, 1, 0
    %v1774 = vsel %vm1758, 1, 0
    %v1775 = vsel %vm1759, 1, 0
    %v1776 = vsel %vm1760, 1, 0
    %v1777 = vsel %vm1761, 1, 0
    %v1778 = vsel %vm1762, 1, 0
    %v1779 = vsel %vm1763, 1, 0
    %v1780 = vsel %vm1764, 1, 0
    %v1781 = vsel %vm1765, 1, 0
    %v1782 = vsel %vm1766, 1, 0
    %v1783 = vsel %vm1767, 1, 0
    %v1784 = vsel %vm1768, 1, 0
    %v1785 = vsel %vm1769, 1, 0
    %v1786 = vsel %vm1770, 1, 0
    %v1787 = vcvt.s32.f32 %v1771
    %v1788 = vcvt.s32.f32 %v1772
    %v1789 = vcvt.s32.f32 %v1773
    %v1790 = vcvt.s32.f32 %v1774
    %v1791 = vcvt.s32.f32 %v1775
    %v1792 = vcvt.s32.f32 %v1776
    %v1793 = vcvt.s32.f32 %v1777
    %v1794 = vcvt.s32.f32 %v1778
    %v1795 = vcvt.s32.f32 %v1779
    %v1796 = vcvt.s32.f32 %v1780
    %v1797 = vcvt.s32.f32 %v1781
    %v1798 = vcvt.s32.f32 %v1782
    %v1799 = vcvt.s32.f32 %v1783
    %v1800 = vcvt.s32.f32 %v1784
    %v1801 = vcvt.s32.f32 %v1785
    %v1802 = vcvt.s32.f32 %v1786
    %s1803 = scalar_lea.vmem %s2, 48
    %v1804 = vld [vmem:[%s1803] sm:$0xff]
    %1805 = vmatpush.msra.mxu0 0.0
    %1806 = vmatpush.msra.mxu0 0.0
    %1807 = vmatpush.msra.mxu0 0.0
    %1808 = vmatpush.msra.mxu0 0.0
    %1809 = vmatpush.msra.mxu0 0.0
    %1810 = vmatpush.msra.mxu0 0.0
    %1811 = vmatpush.msra.mxu0 0.0
    %1812 = vmatpush.msra.mxu0 0.0
    %1813 = vmatpush.msra.mxu0 0.0
    %1814 = vmatpush.msra.mxu0 0.0
    %1815 = vmatpush.msra.mxu0 0.0
    %1816 = vmatpush.msra.mxu0 0.0
    %1817 = vmatpush.msra.mxu0 0.0
    %1818 = vmatpush.msra.mxu0 0.0
    %1819 = vmatpush.msra.mxu0 0.0
    %1820 = vmatpush.msra.mxu0 %v1804
    %1821 = vmatmul.f32.gmra.mxu0 %v188
    %v1822 = vpop.f32.mrf.mxu0
    %v1823 = vadd.f32 0.0, %v1822
    %1824 = vmatmul.f32.gmra.mxu0 %v191
    %v1825 = vpop.f32.mrf.mxu0
    %v1826 = vadd.f32 0.0, %v1825
    %1827 = vdwg.mxu0
    %1828 = vmatpush.msra.mxu0 %v1802
    %1829 = vmatpush.msra.mxu0 %v1801
    %1830 = vmatpush.msra.mxu0 %v1800
    %1831 = vmatpush.msra.mxu0 %v1799
    %1832 = vmatpush.msra.mxu0 %v1798
    %1833 = vmatpush.msra.mxu0 %v1797
    %1834 = vmatpush.msra.mxu0 %v1796
    %1835 = vmatpush.msra.mxu0 %v1795
    %1836 = vmatpush.msra.mxu0 %v1794
    %1837 = vmatpush.msra.mxu0 %v1793
    %1838 = vmatpush.msra.mxu0 %v1792
    %1839 = vmatpush.msra.mxu0 %v1791
    %1840 = vmatpush.msra.mxu0 %v1790
    %1841 = vmatpush.msra.mxu0 %v1789
    %1842 = vmatpush.msra.mxu0 %v1788
    %1843 = vmatpush.msra.mxu0 %v1787
    %1844 = vmatmul.f32.gmra.mxu0 %v96
    %v1845 = vpop.f32.mrf.mxu0
    %v1846 = vadd.f32 0.0, %v1845
    %1847 = vdwg.mxu0
    %v1849 = vsel %vm389, %v1823, 0
    %v1852 = vsel %vm389, %v1826, 0
    %v1855 = vsel %vm396, %v1846, 0
    %1857 = vmatpush.msra.mxu0 0.0
    %1858 = vmatpush.msra.mxu0 0.0
    %1859 = vmatpush.msra.mxu0 0.0
    %1860 = vmatpush.msra.mxu0 0.0
    %1861 = vmatpush.msra.mxu0 0.0
    %1862 = vmatpush.msra.mxu0 0.0
    %1863 = vmatpush.msra.mxu0 0.0
    %1864 = vmatpush.msra.mxu0 0.0
    %1865 = vmatpush.msra.mxu0 0.0
    %1866 = vmatpush.msra.mxu0 0.0
    %1867 = vmatpush.msra.mxu0 0.0
    %1868 = vmatpush.msra.mxu0 0.0
    %1869 = vmatpush.msra.mxu0 0.0
    %1870 = vmatpush.msra.mxu0 0.0
    %1871 = vmatpush.msra.mxu0 0.0
    %1872 = vmatpush.msra.mxu0 %v1855
    %1873 = vmatmul.f32.gmra.mxu0 %v1849
    %v1874 = vpop.f32.mrf.mxu0
    %v1875 = vadd.f32 0.0, %v1874
    %1876 = vmatmul.f32.gmra.mxu0 %v1852
    %v1877 = vpop.f32.mrf.mxu0
    %v1878 = vadd.f32 0.0, %v1877
    %1879 = vdwg.mxu0
    %v1880 = vadd.f32 %v1609, %v1875
    %v1881 = vadd.f32 %v1610, %v1878
    %1882 = vmatpush.msra.mxu0 %v1802
    %1883 = vmatpush.msra.mxu0 %v1801
    %1884 = vmatpush.msra.mxu0 %v1800
    %1885 = vmatpush.msra.mxu0 %v1799
    %1886 = vmatpush.msra.mxu0 %v1798
    %1887 = vmatpush.msra.mxu0 %v1797
    %1888 = vmatpush.msra.mxu0 %v1796
    %1889 = vmatpush.msra.mxu0 %v1795
    %1890 = vmatpush.msra.mxu0 %v1794
    %1891 = vmatpush.msra.mxu0 %v1793
    %1892 = vmatpush.msra.mxu0 %v1792
    %1893 = vmatpush.msra.mxu0 %v1791
    %1894 = vmatpush.msra.mxu0 %v1790
    %1895 = vmatpush.msra.mxu0 %v1789
    %1896 = vmatpush.msra.mxu0 %v1788
    %1897 = vmatpush.msra.mxu0 %v1787
    %1898 = vmatmul.f32.gmra.mxu0 %v98
    %v1899 = vpop.f32.mrf.mxu0
    %v1900 = vadd.f32 0.0, %v1899
    %1901 = vdwg.mxu0
    %v1903 = vsel %vm396, %v1900, 0
    %1905 = vmatpush.msra.mxu0 0.0
    %1906 = vmatpush.msra.mxu0 0.0
    %1907 = vmatpush.msra.mxu0 0.0
    %1908 = vmatpush.msra.mxu0 0.0
    %1909 = vmatpush.msra.mxu0 0.0
    %1910 = vmatpush.msra.mxu0 0.0
    %1911 = vmatpush.msra.mxu0 0.0
    %1912 = vmatpush.msra.mxu0 0.0
    %1913 = vmatpush.msra.mxu0 0.0
    %1914 = vmatpush.msra.mxu0 0.0
    %1915 = vmatpush.msra.mxu0 0.0
    %1916 = vmatpush.msra.mxu0 0.0
    %1917 = vmatpush.msra.mxu0 0.0
    %1918 = vmatpush.msra.mxu0 0.0
    %1919 = vmatpush.msra.mxu0 0.0
    %1920 = vmatpush.msra.mxu0 %v1903
    %1921 = vmatmul.f32.gmra.mxu0 %v1849
    %v1922 = vpop.f32.mrf.mxu0
    %v1923 = vadd.f32 0.0, %v1922
    %1924 = vmatmul.f32.gmra.mxu0 %v1852
    %v1925 = vpop.f32.mrf.mxu0
    %v1926 = vadd.f32 0.0, %v1925
    %1927 = vdwg.mxu0
    %v1928 = vadd.f32 %v1657, %v1923
    %v1929 = vadd.f32 %v1658, %v1926
    %1930 = vmatpush.msra.mxu0 %v1802
    %1931 = vmatpush.msra.mxu0 %v1801
    %1932 = vmatpush.msra.mxu0 %v1800
    %1933 = vmatpush.msra.mxu0 %v1799
    %1934 = vmatpush.msra.mxu0 %v1798
    %1935 = vmatpush.msra.mxu0 %v1797
    %1936 = vmatpush.msra.mxu0 %v1796
    %1937 = vmatpush.msra.mxu0 %v1795
    %1938 = vmatpush.msra.mxu0 %v1794
    %1939 = vmatpush.msra.mxu0 %v1793
    %1940 = vmatpush.msra.mxu0 %v1792
    %1941 = vmatpush.msra.mxu0 %v1791
    %1942 = vmatpush.msra.mxu0 %v1790
    %1943 = vmatpush.msra.mxu0 %v1789
    %1944 = vmatpush.msra.mxu0 %v1788
    %1945 = vmatpush.msra.mxu0 %v1787
    %1946 = vmatmul.f32.gmra.mxu0 %v100
    %v1947 = vpop.f32.mrf.mxu0
    %v1948 = vadd.f32 0.0, %v1947
    %1949 = vdwg.mxu0
    %v1951 = vsel %vm396, %v1948, 0
    %1953 = vmatpush.msra.mxu0 0.0
    %1954 = vmatpush.msra.mxu0 0.0
    %1955 = vmatpush.msra.mxu0 0.0
    %1956 = vmatpush.msra.mxu0 0.0
    %1957 = vmatpush.msra.mxu0 0.0
    %1958 = vmatpush.msra.mxu0 0.0
    %1959 = vmatpush.msra.mxu0 0.0
    %1960 = vmatpush.msra.mxu0 0.0
    %1961 = vmatpush.msra.mxu0 0.0
    %1962 = vmatpush.msra.mxu0 0.0
    %1963 = vmatpush.msra.mxu0 0.0
    %1964 = vmatpush.msra.mxu0 0.0
    %1965 = vmatpush.msra.mxu0 0.0
    %1966 = vmatpush.msra.mxu0 0.0
    %1967 = vmatpush.msra.mxu0 0.0
    %1968 = vmatpush.msra.mxu0 %v1951
    %1969 = vmatmul.f32.gmra.mxu0 %v1849
    %v1970 = vpop.f32.mrf.mxu0
    %v1971 = vadd.f32 0.0, %v1970
    %1972 = vmatmul.f32.gmra.mxu0 %v1852
    %v1973 = vpop.f32.mrf.mxu0
    %v1974 = vadd.f32 0.0, %v1973
    %1975 = vdwg.mxu0
    %v1976 = vadd.f32 %v1705, %v1971
    %v1977 = vadd.f32 %v1706, %v1974
    %1978 = vmatpush.msra.mxu0 %v1802
    %1979 = vmatpush.msra.mxu0 %v1801
    %1980 = vmatpush.msra.mxu0 %v1800
    %1981 = vmatpush.msra.mxu0 %v1799
    %1982 = vmatpush.msra.mxu0 %v1798
    %1983 = vmatpush.msra.mxu0 %v1797
    %1984 = vmatpush.msra.mxu0 %v1796
    %1985 = vmatpush.msra.mxu0 %v1795
    %1986 = vmatpush.msra.mxu0 %v1794
    %1987 = vmatpush.msra.mxu0 %v1793
    %1988 = vmatpush.msra.mxu0 %v1792
    %1989 = vmatpush.msra.mxu0 %v1791
    %1990 = vmatpush.msra.mxu0 %v1790
    %1991 = vmatpush.msra.mxu0 %v1789
    %1992 = vmatpush.msra.mxu0 %v1788
    %1993 = vmatpush.msra.mxu0 %v1787
    %1994 = vmatmul.f32.gmra.mxu0 %v102
    %v1995 = vpop.f32.mrf.mxu0
    %v1996 = vadd.f32 0.0, %v1995
    %1997 = vdwg.mxu0
    %v1999 = vsel %vm396, %v1996, 0
    %2001 = vmatpush.msra.mxu0 0.0
    %2002 = vmatpush.msra.mxu0 0.0
    %2003 = vmatpush.msra.mxu0 0.0
    %2004 = vmatpush.msra.mxu0 0.0
    %2005 = vmatpush.msra.mxu0 0.0
    %2006 = vmatpush.msra.mxu0 0.0
    %2007 = vmatpush.msra.mxu0 0.0
    %2008 = vmatpush.msra.mxu0 0.0
    %2009 = vmatpush.msra.mxu0 0.0
    %2010 = vmatpush.msra.mxu0 0.0
    %2011 = vmatpush.msra.mxu0 0.0
    %2012 = vmatpush.msra.mxu0 0.0
    %2013 = vmatpush.msra.mxu0 0.0
    %2014 = vmatpush.msra.mxu0 0.0
    %2015 = vmatpush.msra.mxu0 0.0
    %2016 = vmatpush.msra.mxu0 %v1999
    %2017 = vmatmul.f32.gmra.mxu0 %v1849
    %v2018 = vpop.f32.mrf.mxu0
    %v2019 = vadd.f32 0.0, %v2018
    %2020 = vmatmul.f32.gmra.mxu0 %v1852
    %v2021 = vpop.f32.mrf.mxu0
    %v2022 = vadd.f32 0.0, %v2021
    %2023 = vdwg.mxu0
    %v2024 = vadd.f32 %v1753, %v2019
    %v2025 = vadd.f32 %v1754, %v2022
    %s2026 = sld [smem:[#allocation3]]
    %p2027 = scmp.eq.s32.totalorder %s2026, 0
    %s2028 = scalar_select %p2027, 1, 0
    %v2029 = vstv %s2028
    %vm2030 = vcmp.eq.s32.totalorder %v2029, 1
    %v2031 = vsel %vm2030, %v1880, %v1881
    %2032 = vadd.xlane.f32.xlu0 %v2031
    %v2033 = vpop.xlane.xlu0 %2032
    %v2034 = vrcp.pop 128.0
    %v2035 = vmul.f32 128.0, %v2034
    %v2036 = vsub.f32 1.0, %v2035
    %v2037 = vmul.f32 %v2034, %v2036
    %v2038 = vadd.f32 %v2034, %v2037
    %vm2039 = vweird.f32 %v2034
    %v2040 = vsel %vm2039, %v2034, %v2038
    %v2041 = vmul.f32 %v2033, %v2040
    %v2042 = vsub.f32 %v2031, %v2041
    %2043 = vmatpush.xpose.msra.mxu0 0.0
    %2044 = vmatpush.xpose.msra.mxu0 0.0
    %2045 = vmatpush.xpose.msra.mxu0 0.0
    %2046 = vmatpush.xpose.msra.mxu0 0.0
    %2047 = vmatpush.xpose.msra.mxu0 0.0
    %2048 = vmatpush.xpose.msra.mxu0 0.0
    %2049 = vmatpush.xpose.msra.mxu0 0.0
    %2050 = vmatpush.xpose.msra.mxu0 0.0
    %2051 = vmatpush.xpose.msra.mxu0 0.0
    %2052 = vmatpush.xpose.msra.mxu0 0.0
    %2053 = vmatpush.xpose.msra.mxu0 0.0
    %2054 = vmatpush.xpose.msra.mxu0 0.0
    %2055 = vmatpush.xpose.msra.mxu0 0.0
    %2056 = vmatpush.xpose.msra.mxu0 0.0
    %2057 = vmatpush.xpose.msra.mxu0 0.0
    %2058 = vmatpush.xpose.msra.mxu0 %v2042
    %2059 = vmatmul.f32.gmra.mxu0 %v2042
    %v2060 = vpop.f32.mrf.mxu0
    %v2061 = vadd.f32 0.0, %v2060
    %2062 = vdwg.mxu0
    %v2063 = vmul.f32 %v2061, 0.007874016
    %v2064 = vadd.f32 %v2063, %v52
    %2065 = vst.msk [vmem:[#allocation4] sm:$0xff] %vm28, %v2064
    %s2066 = sld [smem:[#allocation3 + $0x1]]
    %p2067 = scmp.eq.s32.totalorder %s2066, 0
    %s2068 = scalar_select %p2067, 1, 0
    %v2069 = vstv %s2068
    %vm2070 = vcmp.eq.s32.totalorder %v2069, 1
    %v2071 = vsel %vm2070, %v1928, %v1929
    %2072 = vadd.xlane.f32.xlu0 %v2071
    %v2073 = vpop.xlane.xlu0 %2072
    %v2074 = vmul.f32 %v2073, %v2040
    %v2075 = vsub.f32 %v2071, %v2074
    %2076 = vmatpush.xpose.msra.mxu0 0.0
    %2077 = vmatpush.xpose.msra.mxu0 0.0
    %2078 = vmatpush.xpose.msra.mxu0 0.0
    %2079 = vmatpush.xpose.msra.mxu0 0.0
    %2080 = vmatpush.xpose.msra.mxu0 0.0
    %2081 = vmatpush.xpose.msra.mxu0 0.0
    %2082 = vmatpush.xpose.msra.mxu0 0.0
    %2083 = vmatpush.xpose.msra.mxu0 0.0
    %2084 = vmatpush.xpose.msra.mxu0 0.0
    %2085 = vmatpush.xpose.msra.mxu0 0.0
    %2086 = vmatpush.xpose.msra.mxu0 0.0
    %2087 = vmatpush.xpose.msra.mxu0 0.0
    %2088 = vmatpush.xpose.msra.mxu0 0.0
    %2089 = vmatpush.xpose.msra.mxu0 0.0
    %2090 = vmatpush.xpose.msra.mxu0 0.0
    %2091 = vmatpush.xpose.msra.mxu0 %v2075
    %2092 = vmatmul.f32.gmra.mxu0 %v2075
    %v2093 = vpop.f32.mrf.mxu0
    %v2094 = vadd.f32 0.0, %v2093
    %2095 = vdwg.mxu0
    %v2096 = vmul.f32 %v2094, 0.007874016
    %v2097 = vadd.f32 %v2096, %v52
    %2098 = vst.msk [vmem:[#allocation4 + $0x8] sm:$0xff] %vm28, %v2097
    %s2099 = sld [smem:[#allocation3 + $0x2]]
    %p2100 = scmp.eq.s32.totalorder %s2099, 0
    %s2101 = scalar_select %p2100, 1, 0
    %v2102 = vstv %s2101
    %vm2103 = vcmp.eq.s32.totalorder %v2102, 1
    %v2104 = vsel %vm2103, %v1976, %v1977
    %2105 = vadd.xlane.f32.xlu0 %v2104
    %v2106 = vpop.xlane.xlu0 %2105
    %v2107 = vmul.f32 %v2106, %v2040
    %v2108 = vsub.f32 %v2104, %v2107
    %2109 = vmatpush.xpose.msra.mxu0 0.0
    %2110 = vmatpush.xpose.msra.mxu0 0.0
    %2111 = vmatpush.xpose.msra.mxu0 0.0
    %2112 = vmatpush.xpose.msra.mxu0 0.0
    %2113 = vmatpush.xpose.msra.mxu0 0.0
    %2114 = vmatpush.xpose.msra.mxu0 0.0
    %2115 = vmatpush.xpose.msra.mxu0 0.0
    %2116 = vmatpush.xpose.msra.mxu0 0.0
    %2117 = vmatpush.xpose.msra.mxu0 0.0
    %2118 = vmatpush.xpose.msra.mxu0 0.0
    %2119 = vmatpush.xpose.msra.mxu0 0.0
    %2120 = vmatpush.xpose.msra.mxu0 0.0
    %2121 = vmatpush.xpose.msra.mxu0 0.0
    %2122 = vmatpush.xpose.msra.mxu0 0.0
    %2123 = vmatpush.xpose.msra.mxu0 0.0
    %2124 = vmatpush.xpose.msra.mxu0 %v2108
    %2125 = vmatmul.f32.gmra.mxu0 %v2108
    %v2126 = vpop.f32.mrf.mxu0
    %v2127 = vadd.f32 0.0, %v2126
    %2128 = vdwg.mxu0
    %v2129 = vmul.f32 %v2127, 0.007874016
    %v2130 = vadd.f32 %v2129, %v52
    %2131 = vst.msk [vmem:[#allocation4 + $0x10] sm:$0xff] %vm28, %v2130
    %s2132 = sld [smem:[#allocation3 + $0x3]]
    %p2133 = scmp.eq.s32.totalorder %s2132, 0
    %s2134 = scalar_select %p2133, 1, 0
    %v2135 = vstv %s2134
    %vm2136 = vcmp.eq.s32.totalorder %v2135, 1
    %v2137 = vsel %vm2136, %v2024, %v2025
    %2138 = vadd.xlane.f32.xlu0 %v2137
    %v2139 = vpop.xlane.xlu0 %2138
    %v2140 = vmul.f32 %v2139, %v2040
    %v2141 = vsub.f32 %v2137, %v2140
    %2142 = vmatpush.xpose.msra.mxu0 0.0
    %2143 = vmatpush.xpose.msra.mxu0 0.0
    %2144 = vmatpush.xpose.msra.mxu0 0.0
    %2145 = vmatpush.xpose.msra.mxu0 0.0
    %2146 = vmatpush.xpose.msra.mxu0 0.0
    %2147 = vmatpush.xpose.msra.mxu0 0.0
    %2148 = vmatpush.xpose.msra.mxu0 0.0
    %2149 = vmatpush.xpose.msra.mxu0 0.0
    %2150 = vmatpush.xpose.msra.mxu0 0.0
    %2151 = vmatpush.xpose.msra.mxu0 0.0
    %2152 = vmatpush.xpose.msra.mxu0 0.0
    %2153 = vmatpush.xpose.msra.mxu0 0.0
    %2154 = vmatpush.xpose.msra.mxu0 0.0
    %2155 = vmatpush.xpose.msra.mxu0 0.0
    %2156 = vmatpush.xpose.msra.mxu0 0.0
    %2157 = vmatpush.xpose.msra.mxu0 %v2141
    %2158 = vmatmul.f32.gmra.mxu0 %v2141
    %v2159 = vpop.f32.mrf.mxu0
    %v2160 = vadd.f32 0.0, %v2159
    %2161 = vdwg.mxu0
    %v2162 = vmul.f32 %v2160, 0.007874016
    %v2163 = vadd.f32 %v2162, %v52
    %2164 = vst.msk [vmem:[#allocation4 + $0x18] sm:$0xff] %vm28, %v2163
    // Predicated region
    $region18: #{jade_forward.1} parent=1 // pred_check
      _
    $region19: #{jade_forward.1} parent=1 // pred_check_branch
      %2166 = sbr.rel (0) target = $region21
    $region20: #{jade_forward.1} parent=1 // pred_region
      %2168 = vsyncadd [#allocation5], 0
      %s2169 = sshll.u32 [#allocation4], 4
      %s2170 = int_to_ptr.vmem [resolvable:$true] %s2169
      %s2171 = sshll.u32 %s5, 4
      %s2172 = int_to_ptr.hbm [resolvable:$true] %s2171
      %2177 = dma.vmem_to_hbm [thread:$0]  %s2170, 512, %s2172, [#allocation5], 128, 128, 8
    $region21: #{jade_forward.1} parent=1 // pred_fallthru
      _
    // Predicated region
    $region22: #{jade_forward.1} parent=1 // pred_check
      _
    $region23: #{jade_forward.1} parent=1 // pred_check_branch
      %2179 = sbr.rel (0) target = $region25
    $region24: #{jade_forward.1} parent=1 // pred_region
      %2181 = dma.done [#allocation5], 512
    $region25: #{jade_forward.1} parent=1 // pred_fallthru
      _
    %2182 = vsyncpa [#allocation5], 1

</llo_original>
